<compile_context>
chip_gen: v6e
topology: v6e:2x2x1
jax: 0.10.0
libtpu: 0.0.40
codegen_flags: <defaults>
</compile_context>

<pallas_src>
import functools

import jax
import jax.numpy as jnp
from jax.experimental import pallas as pl
from jax.experimental.pallas import tpu as pltpu


def _layer_norm(x, gamma, beta, eps=1e-6):
    """LayerNorm over the last axis (two-pass variance, matches nn.LayerNorm)."""
    mu = jnp.mean(x, axis=-1, keepdims=True)
    xc = x - mu
    var = jnp.mean(xc * xc, axis=-1, keepdims=True)
    return xc * jax.lax.rsqrt(var + eps) * gamma + beta


def _attention_block_kernel(
    q_ref, kh_ref, vh_ref,
    wq_ref, wfc_ref,
    ln1_g_ref, ln1_b_ref,
    w1_ref, b1_ref, w2_ref, b2_ref,
    ln2_g_ref, ln2_b_ref,
    out_ref, attn_ref,
    *, n_head, d_k, d_v, matmul_dtype, approx_recip,
):
    H, dk, dv = n_head, d_k, d_v
    mm = matmul_dtype

    q_res = q_ref[0]                           # (tq, D) f32 residual
    tq = q_res.shape[0]

    # --- Q projection (1/sqrt(d_k) pre-folded into wq); bf16 operands, f32 MXU acc.
    Q = jnp.dot(q_res.astype(mm), wq_ref[...],
                preferred_element_type=jnp.float32)                 # (tq, H*dk)
    # Head split: one reshape + one major-axis relayout (no per-head slicing).
    Qh = jnp.transpose(Q.astype(mm).reshape(tq, H, dk), (1, 0, 2))  # (H, tq, dk)

    # K/V arrive pre-projected and pre-split from the wrapper (q-tile invariant).
    Kh = kh_ref[0]                             # (H, Lk, dk)
    Vh = vh_ref[0]                             # (H, Lv, dv)

    # --- scaled dot-product attention, batched over heads (single contractions).
    scores = jnp.einsum("hqd,hkd->hqk", Qh, Kh,
                        preferred_element_type=jnp.float32)         # (H, tq, Lk)
    scores = scores - jnp.max(scores, axis=-1, keepdims=True)
    e = jnp.exp(scores)
    p = e * pl.reciprocal(jnp.sum(e, axis=-1, keepdims=True), approx=approx_recip)
    attn_ref[0] = p.astype(attn_ref.dtype)

    ctx = jnp.einsum("hqk,hkd->hqd", p.astype(mm), Vh,
                     preferred_element_type=jnp.float32)            # (H, tq, dv)
    # Head merge: one relayout back to (tq, H*dv).
    o = jnp.transpose(ctx.astype(mm), (1, 0, 2)).reshape(tq, H * dv)

    # --- output projection + residual + LayerNorm(eps=1e-6). Dropout = identity.
    o = jnp.dot(o, wfc_ref[...], preferred_element_type=jnp.float32)
    o = o + q_res
    o = _layer_norm(o, ln1_g_ref[0], ln1_b_ref[0])

    # --- position-wise feed-forward + residual + LayerNorm(eps=1e-6).
    h1 = jnp.dot(o.astype(mm), w1_ref[...],
                 preferred_element_type=jnp.float32) + b1_ref[0]
    h1 = jnp.maximum(h1, 0.0)                                       # ReLU
    h2 = jnp.dot(h1.astype(mm), w2_ref[...],
                 preferred_element_type=jnp.float32) + b2_ref[0]
    h2 = h2 + o
    out_ref[0] = _layer_norm(h2, ln2_g_ref[0], ln2_b_ref[0]).astype(out_ref.dtype)


def _default_vmem_limit(tq, Lk, Lv, D, H, d_k, d_v, hid, mm_bytes, attn_bytes):
    """Scoped-VMEM limit derived from the actual block footprint + chip capacity."""
    f32 = 4
    blocks = (
        2 * tq * D * f32                                   # q (double-buffered)
        + 2 * H * Lk * d_k * mm_bytes                      # Kh (double-buffered)
        + 2 * H * Lv * d_v * mm_bytes                      # Vh (double-buffered)
        + (D * H * d_k + H * d_v * D + D * hid + hid * D) * mm_bytes  # weights, Buffered(1)
        + (hid + 6 * D) * f32                              # biases + LN params, Buffered(1)
        + 2 * tq * D * f32                                 # out (double-buffered)
        + 2 * H * tq * Lk * attn_bytes                     # attn out (double-buffered)
    )
    # In-kernel live intermediates: scores/probs, ctx, h1, LayerNorm temporaries.
    live = (2 * H * tq * Lk + H * tq * d_v + tq * hid + 6 * tq * D) * f32
    need = blocks + live
    try:
        cap = pltpu.get_tpu_info().vmem_capacity_bytes     # 64 MiB v7x, 128 MiB v5e/v6e
    except Exception:
        cap = 64 * 1024 * 1024
    return int(max(32 * 1024 * 1024, min(need * 3 // 2, cap * 3 // 4)))


def attention_block_kv_cache(q, k, v, params, *, n_head, block_q=128,
                             matmul_dtype=jnp.bfloat16, attn_dtype=jnp.float32,
                             vmem_limit_bytes=None):
    """q,k,v: (B, L, D) float32. Returns (output (B,Lq,D) f32, attn (B,H,Lq,Lk))."""
    B, Lq, D = q.shape
    Lk = k.shape[1]
    Lv = v.shape[1]
    d_k = D // n_head
    d_v = D // n_head
    hid = params["w1"].shape[1]
    mm = matmul_dtype

    # q-tile size: 128 matches the MXU M dim on every generation; raise block_q to
    # 256 on v6e (128 MiB VMEM, 256-wide MXU) when the footprint allows. Fall back
    # to the full length when it does not divide evenly.
    tq = block_q if (Lq % block_q == 0) else Lq
    n_q = Lq // tq

    # Fold 1/sqrt(d_k) into w_qs (no in-kernel divide); cast weights to bf16.
    inv_temp = 1.0 / (d_k ** 0.5)
    w_qs = (params["w_qs"] * inv_temp).astype(mm)
    fc = params["fc"].astype(mm)
    w1 = params["w1"].astype(mm)
    w2 = params["w2"].astype(mm)

    # K/V projections and head relayout are q-tile invariant: hoist them out of the
    # kernel (plain XLA matmuls) so they run once per call, not once per q tile,
    # and DMA into the kernel in matmul dtype (halves K/V bytes on the bf16 path).
    kh = jnp.transpose(
        jnp.matmul(k, params["w_ks"]).reshape(B, Lk, n_head, d_k), (0, 2, 1, 3)
    ).astype(mm)
    vh = jnp.transpose(
        jnp.matmul(v, params["w_vs"]).reshape(B, Lv, n_head, d_v), (0, 2, 1, 3)
    ).astype(mm)

    if vmem_limit_bytes is None:
        vmem_limit_bytes = _default_vmem_limit(
            tq, Lk, Lv, D, n_head, d_k, d_v, hid,
            jnp.dtype(mm).itemsize, jnp.dtype(attn_dtype).itemsize)

    kernel = functools.partial(
        _attention_block_kernel,
        n_head=n_head, d_k=d_k, d_v=d_v, matmul_dtype=mm,
        approx_recip=(jnp.dtype(mm) != jnp.dtype(jnp.float32)),
    )

    def bcast(shape):
        # Grid-invariant operand: single-buffered (never re-DMA'd, half the VMEM).
        return pl.BlockSpec(shape, lambda b, qi: (0,) * len(shape),
                            pipeline_mode=pl.Buffered(buffer_count=1))

    grid_spec = pltpu.PrefetchScalarGridSpec(
        num_scalar_prefetch=0,
        grid=(B, n_q),                                               # qi innermost
        in_specs=[
            pl.BlockSpec((1, tq, D), lambda b, qi: (b, qi, 0)),          # q
            pl.BlockSpec((1, n_head, Lk, d_k), lambda b, qi: (b, 0, 0, 0)),  # Kh
            pl.BlockSpec((1, n_head, Lv, d_v), lambda b, qi: (b, 0, 0, 0)),  # Vh
            bcast((D, n_head * d_k)),                                # w_qs (pre-scaled)
            bcast((n_head * d_v, D)),                                # fc
            bcast((1, D)),                                           # ln1 gamma
            bcast((1, D)),                                           # ln1 beta
            bcast((D, hid)),                                         # w_1
            bcast((1, hid)),                                         # b_1
            bcast((hid, D)),                                         # w_2
            bcast((1, D)),                                           # b_2
            bcast((1, D)),                                           # ln2 gamma
            bcast((1, D)),                                           # ln2 beta
        ],
        out_specs=[
            pl.BlockSpec((1, tq, D), lambda b, qi: (b, qi, 0)),
            pl.BlockSpec((1, n_head, tq, Lk), lambda b, qi: (b, 0, qi, 0)),
        ],
    )

    out_shapes = (
        jax.ShapeDtypeStruct((B, Lq, D), jnp.float32),
        jax.ShapeDtypeStruct((B, n_head, Lq, Lk), attn_dtype),
    )

    return pl.pallas_call(
        kernel,
        grid_spec=grid_spec,
        out_shape=out_shapes,
        compiler_params=pltpu.CompilerParams(
            dimension_semantics=("parallel", "parallel"),
            vmem_limit_bytes=vmem_limit_bytes,
        ),
    )(
        q, kh, vh,
        w_qs, fc,
        params["ln1_g"], params["ln1_b"],
        w1, params["b1"], w2, params["b2"],
        params["ln2_g"], params["ln2_b"],
    )


def _reference(q, k, v, params, n_head):
    """Pure-JAX f32 reference mirroring the PyTorch forward (eval mode)."""
    B, Lq, D = q.shape
    d_k = D // n_head
    temp = d_k ** 0.5
    Q = (q @ params["w_qs"]).reshape(B, Lq, n_head, d_k).transpose(0, 2, 1, 3)
    K = (k @ params["w_ks"]).reshape(B, k.shape[1], n_head, d_k).transpose(0, 2, 1, 3)
    V = (v @ params["w_vs"]).reshape(B, v.shape[1], n_head, d_k).transpose(0, 2, 1, 3)
    scores = jnp.einsum("bhqd,bhkd->bhqk", Q / temp, K)
    attn = jax.nn.softmax(scores, axis=-1)
    o = jnp.einsum("bhqk,bhkd->bhqd", attn, V).transpose(0, 2, 1, 3).reshape(B, Lq, D)
    o = o @ params["fc"] + q
    mu = o.mean(-1, keepdims=True)
    var = ((o - mu) ** 2).mean(-1, keepdims=True)
    o = (o - mu) / jnp.sqrt(var + 1e-6) * params["ln1_g"][0] + params["ln1_b"][0]
    h1 = jax.nn.relu(o @ params["w1"] + params["b1"][0])
    h2 = h1 @ params["w2"] + params["b2"][0] + o
    mu2 = h2.mean(-1, keepdims=True)
    var2 = ((h2 - mu2) ** 2).mean(-1, keepdims=True)
    out = (h2 - mu2) / jnp.sqrt(var2 + 1e-6) * params["ln2_g"][0] + params["ln2_b"][0]
    return out, attn


if __name__ == "__main__":
    # Small shapes consistent with the module.
    B, Lq, Lk = 2, 8, 8
    feat_dim, hidden_dim, num_heads = 32, 64, 4
    d_k = feat_dim // num_heads

    key = jax.random.PRNGKey(0)
    keys = jax.random.split(key, 12)

    def init(k, shape, scale=0.1):
        return (scale * jax.random.normal(k, shape)).astype(jnp.float32)

    params = {
        "w_qs": init(keys[0], (feat_dim, num_heads * d_k)),
        "w_ks": init(keys[1], (feat_dim, num_heads * d_k)),
        "w_vs": init(keys[2], (feat_dim, num_heads * d_k)),
        "fc":   init(keys[3], (num_heads * d_k, feat_dim)),
        "ln1_g": jnp.ones((1, feat_dim), jnp.float32),
        "ln1_b": jnp.zeros((1, feat_dim), jnp.float32),
        "w1": init(keys[4], (feat_dim, hidden_dim)),
        "b1": init(keys[5], (1, hidden_dim)),
        "w2": init(keys[6], (hidden_dim, feat_dim)),
        "b2": init(keys[7], (1, feat_dim)),
        "ln2_g": jnp.ones((1, feat_dim), jnp.float32),
        "ln2_b": jnp.zeros((1, feat_dim), jnp.float32),
    }

    q = init(keys[8], (B, Lq, feat_dim), scale=1.0)
    k = init(keys[9], (B, Lk, feat_dim), scale=1.0)
    v = init(keys[10], (B, Lk, feat_dim), scale=1.0)

    ref_out, ref_attn = _reference(q, k, v, params, num_heads)

    # f32 matmul path: tight check against the f32 reference.
    out32, attn32 = attention_block_kv_cache(
        q, k, v, params, n_head=num_heads, matmul_dtype=jnp.float32)
    out32, attn32 = jax.block_until_ready((out32, attn32))
    assert out32.shape == (B, Lq, feat_dim) and attn32.shape == (B, num_heads, Lq, Lk)
    assert jnp.allclose(out32, ref_out, atol=1e-4, rtol=1e-4)
    assert jnp.allclose(attn32, ref_attn, atol=1e-5, rtol=1e-5)

    # bf16 MXU path (default): relaxed tolerance vs. the f32 reference.
    out, attn = attention_block_kv_cache(q, k, v, params, n_head=num_heads)
    out, attn = jax.block_until_ready((out, attn))
    assert out.shape == (B, Lq, feat_dim) and attn.shape == (B, num_heads, Lq, Lk)
    assert jnp.allclose(out, ref_out, atol=5e-2, rtol=5e-2)
    assert jnp.allclose(attn, ref_attn, atol=2e-2, rtol=2e-2)

    # bf16 attention-probability output (halves attn writeback bandwidth on v5e).
    out_b, attn_b = attention_block_kv_cache(
        q, k, v, params, n_head=num_heads, attn_dtype=jnp.bfloat16)
    out_b, attn_b = jax.block_until_ready((out_b, attn_b))
    assert attn_b.dtype == jnp.bfloat16
    assert jnp.allclose(out_b, ref_out, atol=5e-2, rtol=5e-2)
    assert jnp.allclose(attn_b.astype(jnp.float32), ref_attn, atol=3e-2, rtol=3e-2)

    print("KERNEL_OK")
</pallas_src>

<mosaic_0001>
module attributes {stable_mosaic.version = 11 : i64} {
  func.func @_attention_block_kernel(%arg0: i32, %arg1: i32, %arg2: memref<1x8x32xf32, #tpu.memory_space<vmem>>, %arg3: memref<1x4x8x8xf32, #tpu.memory_space<vmem>>, %arg4: memref<1x4x8x8xf32, #tpu.memory_space<vmem>>, %arg5: memref<32x32xf32, #tpu.memory_space<vmem>>, %arg6: memref<32x32xf32, #tpu.memory_space<vmem>>, %arg7: memref<1x32xf32, #tpu.memory_space<vmem>>, %arg8: memref<1x32xf32, #tpu.memory_space<vmem>>, %arg9: memref<32x64xf32, #tpu.memory_space<vmem>>, %arg10: memref<1x64xf32, #tpu.memory_space<vmem>>, %arg11: memref<64x32xf32, #tpu.memory_space<vmem>>, %arg12: memref<1x32xf32, #tpu.memory_space<vmem>>, %arg13: memref<1x32xf32, #tpu.memory_space<vmem>>, %arg14: memref<1x32xf32, #tpu.memory_space<vmem>>, %arg15: memref<1x8x32xf32, #tpu.memory_space<vmem>>, %arg16: memref<1x4x8x8xf32, #tpu.memory_space<vmem>>) attributes {dimension_semantics = [#tpu.dimension_semantics<parallel>, #tpu.dimension_semantics<parallel>], iteration_bounds = array<i64: 2, 1>, scalar_prefetch = 0 : i64, scratch_operands = 0 : i64, tpu.core_type = #tpu.core_type<tc>, window_params = [{transform_indices = @transform_0, window_bounds = array<i64: 1, 8, 32>}, {transform_indices = @transform_1, window_bounds = array<i64: 1, 4, 8, 8>}, {transform_indices = @transform_2, window_bounds = array<i64: 1, 4, 8, 8>}, {pipeline_mode = #tpu.pipeline_mode<synchronous>, transform_indices = @transform_3, window_bounds = array<i64: 32, 32>}, {pipeline_mode = #tpu.pipeline_mode<synchronous>, transform_indices = @transform_4, window_bounds = array<i64: 32, 32>}, {pipeline_mode = #tpu.pipeline_mode<synchronous>, transform_indices = @transform_5, window_bounds = array<i64: 1, 32>}, {pipeline_mode = #tpu.pipeline_mode<synchronous>, transform_indices = @transform_6, window_bounds = array<i64: 1, 32>}, {pipeline_mode = #tpu.pipeline_mode<synchronous>, transform_indices = @transform_7, window_bounds = array<i64: 32, 64>}, {pipeline_mode = #tpu.pipeline_mode<synchronous>, transform_indices = @transform_8, window_bounds = array<i64: 1, 64>}, {pipeline_mode = #tpu.pipeline_mode<synchronous>, transform_indices = @transform_9, window_bounds = array<i64: 64, 32>}, {pipeline_mode = #tpu.pipeline_mode<synchronous>, transform_indices = @transform_10, window_bounds = array<i64: 1, 32>}, {pipeline_mode = #tpu.pipeline_mode<synchronous>, transform_indices = @transform_11, window_bounds = array<i64: 1, 32>}, {pipeline_mode = #tpu.pipeline_mode<synchronous>, transform_indices = @transform_12, window_bounds = array<i64: 1, 32>}, {transform_indices = @transform_13, window_bounds = array<i64: 1, 8, 32>}, {transform_indices = @transform_14, window_bounds = array<i64: 1, 4, 8, 8>}]} {
    %c0 = arith.constant 0 : index
    %c0_0 = arith.constant 0 : index
    %c0_1 = arith.constant 0 : index
    %0 = vector.load %arg2[%c0, %c0_0, %c0_1] : memref<1x8x32xf32, #tpu.memory_space<vmem>>, vector<1x8x32xf32>
    %1 = vector.shape_cast %0 : vector<1x8x32xf32> to vector<8x32xf32>
    %c0_2 = arith.constant 0 : index
    %c0_3 = arith.constant 0 : index
    %2 = vector.load %arg5[%c0_2, %c0_3] : memref<32x32xf32, #tpu.memory_space<vmem>>, vector<32x32xf32>
    %cst = arith.constant dense<0.000000e+00> : vector<8x32xf32>
    %3 = tpu.matmul %1, %2, %cst {dimension_numbers = #tpu.dot_dimension_numbers<[1], [0], [0], [1], [0, 0, 1, 1], [], []>} : vector<8x32xf32>, vector<32x32xf32>, vector<8x32xf32> -> vector<8x32xf32>
    %4 = vector.shape_cast %3 : vector<8x32xf32> to vector<8x4x8xf32>
    %5 = tpu.transpose %4, [1, 0, 2] : vector<8x4x8xf32> -> vector<4x8x8xf32>
    %c0_4 = arith.constant 0 : index
    %c0_5 = arith.constant 0 : index
    %c0_6 = arith.constant 0 : index
    %c0_7 = arith.constant 0 : index
    %6 = vector.load %arg3[%c0_4, %c0_5, %c0_6, %c0_7] : memref<1x4x8x8xf32, #tpu.memory_space<vmem>>, vector<1x4x8x8xf32>
    %7 = vector.shape_cast %6 : vector<1x4x8x8xf32> to vector<4x8x8xf32>
    %c0_8 = arith.constant 0 : index
    %c0_9 = arith.constant 0 : index
    %c0_10 = arith.constant 0 : index
    %c0_11 = arith.constant 0 : index
    %8 = vector.load %arg4[%c0_8, %c0_9, %c0_10, %c0_11] : memref<1x4x8x8xf32, #tpu.memory_space<vmem>>, vector<1x4x8x8xf32>
    %9 = vector.shape_cast %8 : vector<1x4x8x8xf32> to vector<4x8x8xf32>
    "tpu.trace_start"() <{level = 10 : i32, message = "hqd,hkd->hqk"}> : () -> ()
    %cst_12 = arith.constant dense<0.000000e+00> : vector<4x8x8xf32>
    %10 = tpu.matmul %5, %7, %cst_12 {dimension_numbers = #tpu.dot_dimension_numbers<[2], [2], [1], [1], [0, 0, 0, 1, 1, 1], [0], [0]>} : vector<4x8x8xf32>, vector<4x8x8xf32>, vector<4x8x8xf32> -> vector<4x8x8xf32>
    "tpu.trace_stop"() : () -> ()
    %cst_13 = arith.constant dense<0xFF800000> : vector<4x8xf32>
    %11 = vector.multi_reduction <maximumf>, %10, %cst_13 [2] : vector<4x8x8xf32> to vector<4x8xf32>
    %12 = vector.shape_cast %11 : vector<4x8xf32> to vector<4x8x1xf32>
    %13 = vector.broadcast %12 : vector<4x8x1xf32> to vector<4x8x8xf32>
    %14 = arith.subf %10, %13 : vector<4x8x8xf32>
    %15 = math.exp %14 : vector<4x8x8xf32>
    %cst_14 = arith.constant dense<0.000000e+00> : vector<4x8xf32>
    %16 = vector.multi_reduction <add>, %15, %cst_14 [2] : vector<4x8x8xf32> to vector<4x8xf32>
    %17 = vector.shape_cast %16 : vector<4x8xf32> to vector<4x8x1xf32>
    %18 = tpu.reciprocal %17 : vector<4x8x1xf32> -> vector<4x8x1xf32>
    %19 = vector.broadcast %18 : vector<4x8x1xf32> to vector<4x8x8xf32>
    %20 = arith.mulf %15, %19 : vector<4x8x8xf32>
    %c0_15 = arith.constant 0 : index
    %c0_16 = arith.constant 0 : index
    %c0_17 = arith.constant 0 : index
    %c0_18 = arith.constant 0 : index
    %21 = vector.load %arg16[%c0_15, %c0_16, %c0_17, %c0_18] : memref<1x4x8x8xf32, #tpu.memory_space<vmem>>, vector<1x4x8x8xf32>
    %22 = vector.shape_cast %21 : vector<1x4x8x8xf32> to vector<4x8x8xf32>
    %23 = vector.shape_cast %20 : vector<4x8x8xf32> to vector<1x4x8x8xf32>
    tpu.vector_store %arg16[%c0_15, %c0_16, %c0_17, %c0_18], %23 {strides = array<i32>} : memref<1x4x8x8xf32, #tpu.memory_space<vmem>>, vector<1x4x8x8xf32>,
    "tpu.trace_start"() <{level = 10 : i32, message = "hqk,hkd->hqd"}> : () -> ()
    %cst_19 = arith.constant dense<0.000000e+00> : vector<4x8x8xf32>
    %24 = tpu.matmul %20, %9, %cst_19 {dimension_numbers = #tpu.dot_dimension_numbers<[2], [1], [1], [2], [0, 0, 0, 1, 1, 2], [0], [0]>} : vector<4x8x8xf32>, vector<4x8x8xf32>, vector<4x8x8xf32> -> vector<4x8x8xf32>
    "tpu.trace_stop"() : () -> ()
    %25 = tpu.transpose %24, [1, 0, 2] : vector<4x8x8xf32> -> vector<8x4x8xf32>
    %26 = vector.shape_cast %25 : vector<8x4x8xf32> to vector<8x32xf32>
    %c0_20 = arith.constant 0 : index
    %c0_21 = arith.constant 0 : index
    %27 = vector.load %arg6[%c0_20, %c0_21] : memref<32x32xf32, #tpu.memory_space<vmem>>, vector<32x32xf32>
    %cst_22 = arith.constant dense<0.000000e+00> : vector<8x32xf32>
    %28 = tpu.matmul %26, %27, %cst_22 {dimension_numbers = #tpu.dot_dimension_numbers<[1], [0], [0], [1], [0, 0, 1, 1], [], []>} : vector<8x32xf32>, vector<32x32xf32>, vector<8x32xf32> -> vector<8x32xf32>
    %29 = arith.addf %28, %1 : vector<8x32xf32>
    %c0_23 = arith.constant 0 : index
    %c0_24 = arith.constant 0 : index
    %30 = vector.load %arg7[%c0_23, %c0_24] : memref<1x32xf32, #tpu.memory_space<vmem>>, vector<1x32xf32>
    %31 = vector.shape_cast %30 : vector<1x32xf32> to vector<32xf32>
    %c0_25 = arith.constant 0 : index
    %c0_26 = arith.constant 0 : index
    %32 = vector.load %arg8[%c0_25, %c0_26] : memref<1x32xf32, #tpu.memory_space<vmem>>, vector<1x32xf32>
    %33 = vector.shape_cast %32 : vector<1x32xf32> to vector<32xf32>
    %cst_27 = arith.constant dense<0.000000e+00> : vector<8xf32>
    %34 = vector.multi_reduction <add>, %29, %cst_27 [1] : vector<8x32xf32> to vector<8xf32>
    %35 = vector.shape_cast %34 : vector<8xf32> to vector<8x1xf32>
    %cst_28 = arith.constant 3.200000e+01 : f32
    %36 = vector.broadcast %cst_28 : f32 to vector<8x1xf32>
    %37 = arith.divf %35, %36 : vector<8x1xf32>
    %38 = vector.broadcast %37 : vector<8x1xf32> to vector<8x32xf32>
    %39 = arith.subf %29, %38 : vector<8x32xf32>
    %40 = arith.mulf %39, %39 : vector<8x32xf32>
    %cst_29 = arith.constant dense<0.000000e+00> : vector<8xf32>
    %41 = vector.multi_reduction <add>, %40, %cst_29 [1] : vector<8x32xf32> to vector<8xf32>
    %42 = vector.shape_cast %41 : vector<8xf32> to vector<8x1xf32>
    %cst_30 = arith.constant 3.200000e+01 : f32
    %43 = vector.broadcast %cst_30 : f32 to vector<8x1xf32>
    %44 = arith.divf %42, %43 : vector<8x1xf32>
    %cst_31 = arith.constant 9.99999997E-7 : f32
    %45 = vector.broadcast %cst_31 : f32 to vector<8x1xf32>
    %46 = arith.addf %44, %45 : vector<8x1xf32>
    %47 = math.rsqrt %46 : vector<8x1xf32>
    %48 = vector.broadcast %47 : vector<8x1xf32> to vector<8x32xf32>
    %49 = arith.mulf %39, %48 : vector<8x32xf32>
    %50 = vector.shape_cast %31 : vector<32xf32> to vector<1x32xf32>
    %51 = vector.broadcast %50 : vector<1x32xf32> to vector<8x32xf32>
    %52 = arith.mulf %49, %51 : vector<8x32xf32>
    %53 = vector.shape_cast %33 : vector<32xf32> to vector<1x32xf32>
    %54 = vector.broadcast %53 : vector<1x32xf32> to vector<8x32xf32>
    %55 = arith.addf %52, %54 : vector<8x32xf32>
    %c0_32 = arith.constant 0 : index
    %c0_33 = arith.constant 0 : index
    %56 = vector.load %arg9[%c0_32, %c0_33] : memref<32x64xf32, #tpu.memory_space<vmem>>, vector<32x64xf32>
    %cst_34 = arith.constant dense<0.000000e+00> : vector<8x64xf32>
    %57 = tpu.matmul %55, %56, %cst_34 {dimension_numbers = #tpu.dot_dimension_numbers<[1], [0], [0], [1], [0, 0, 1, 1], [], []>} : vector<8x32xf32>, vector<32x64xf32>, vector<8x64xf32> -> vector<8x64xf32>
    %c0_35 = arith.constant 0 : index
    %c0_36 = arith.constant 0 : index
    %58 = vector.load %arg10[%c0_35, %c0_36] : memref<1x64xf32, #tpu.memory_space<vmem>>, vector<1x64xf32>
    %59 = vector.shape_cast %58 : vector<1x64xf32> to vector<64xf32>
    %60 = vector.shape_cast %59 : vector<64xf32> to vector<1x64xf32>
    %61 = vector.broadcast %60 : vector<1x64xf32> to vector<8x64xf32>
    %62 = arith.addf %57, %61 : vector<8x64xf32>
    %cst_37 = arith.constant 0.000000e+00 : f32
    %63 = vector.broadcast %cst_37 : f32 to vector<8x64xf32>
    %64 = arith.maximumf %62, %63 : vector<8x64xf32>
    %c0_38 = arith.constant 0 : index
    %c0_39 = arith.constant 0 : index
    %65 = vector.load %arg11[%c0_38, %c0_39] : memref<64x32xf32, #tpu.memory_space<vmem>>, vector<64x32xf32>
    %cst_40 = arith.constant dense<0.000000e+00> : vector<8x32xf32>
    %66 = tpu.matmul %64, %65, %cst_40 {dimension_numbers = #tpu.dot_dimension_numbers<[1], [0], [0], [1], [0, 0, 1, 1], [], []>} : vector<8x64xf32>, vector<64x32xf32>, vector<8x32xf32> -> vector<8x32xf32>
    %c0_41 = arith.constant 0 : index
    %c0_42 = arith.constant 0 : index
    %67 = vector.load %arg12[%c0_41, %c0_42] : memref<1x32xf32, #tpu.memory_space<vmem>>, vector<1x32xf32>
    %68 = vector.shape_cast %67 : vector<1x32xf32> to vector<32xf32>
    %69 = vector.shape_cast %68 : vector<32xf32> to vector<1x32xf32>
    %70 = vector.broadcast %69 : vector<1x32xf32> to vector<8x32xf32>
    %71 = arith.addf %66, %70 : vector<8x32xf32>
    %72 = arith.addf %71, %55 : vector<8x32xf32>
    %c0_43 = arith.constant 0 : index
    %c0_44 = arith.constant 0 : index
    %73 = vector.load %arg13[%c0_43, %c0_44] : memref<1x32xf32, #tpu.memory_space<vmem>>, vector<1x32xf32>
    %74 = vector.shape_cast %73 : vector<1x32xf32> to vector<32xf32>
    %c0_45 = arith.constant 0 : index
    %c0_46 = arith.constant 0 : index
    %75 = vector.load %arg14[%c0_45, %c0_46] : memref<1x32xf32, #tpu.memory_space<vmem>>, vector<1x32xf32>
    %76 = vector.shape_cast %75 : vector<1x32xf32> to vector<32xf32>
    %cst_47 = arith.constant dense<0.000000e+00> : vector<8xf32>
    %77 = vector.multi_reduction <add>, %72, %cst_47 [1] : vector<8x32xf32> to vector<8xf32>
    %78 = vector.shape_cast %77 : vector<8xf32> to vector<8x1xf32>
    %cst_48 = arith.constant 3.200000e+01 : f32
    %79 = vector.broadcast %cst_48 : f32 to vector<8x1xf32>
    %80 = arith.divf %78, %79 : vector<8x1xf32>
    %81 = vector.broadcast %80 : vector<8x1xf32> to vector<8x32xf32>
    %82 = arith.subf %72, %81 : vector<8x32xf32>
    %83 = arith.mulf %82, %82 : vector<8x32xf32>
    %cst_49 = arith.constant dense<0.000000e+00> : vector<8xf32>
    %84 = vector.multi_reduction <add>, %83, %cst_49 [1] : vector<8x32xf32> to vector<8xf32>
    %85 = vector.shape_cast %84 : vector<8xf32> to vector<8x1xf32>
    %cst_50 = arith.constant 3.200000e+01 : f32
    %86 = vector.broadcast %cst_50 : f32 to vector<8x1xf32>
    %87 = arith.divf %85, %86 : vector<8x1xf32>
    %cst_51 = arith.constant 9.99999997E-7 : f32
    %88 = vector.broadcast %cst_51 : f32 to vector<8x1xf32>
    %89 = arith.addf %87, %88 : vector<8x1xf32>
    %90 = math.rsqrt %89 : vector<8x1xf32>
    %91 = vector.broadcast %90 : vector<8x1xf32> to vector<8x32xf32>
    %92 = arith.mulf %82, %91 : vector<8x32xf32>
    %93 = vector.shape_cast %74 : vector<32xf32> to vector<1x32xf32>
    %94 = vector.broadcast %93 : vector<1x32xf32> to vector<8x32xf32>
    %95 = arith.mulf %92, %94 : vector<8x32xf32>
    %96 = vector.shape_cast %76 : vector<32xf32> to vector<1x32xf32>
    %97 = vector.broadcast %96 : vector<1x32xf32> to vector<8x32xf32>
    %98 = arith.addf %95, %97 : vector<8x32xf32>
    %c0_52 = arith.constant 0 : index
    %c0_53 = arith.constant 0 : index
    %c0_54 = arith.constant 0 : index
    %99 = vector.load %arg15[%c0_52, %c0_53, %c0_54] : memref<1x8x32xf32, #tpu.memory_space<vmem>>, vector<1x8x32xf32>
    %100 = vector.shape_cast %99 : vector<1x8x32xf32> to vector<8x32xf32>
    %101 = vector.shape_cast %98 : vector<8x32xf32> to vector<1x8x32xf32>
    tpu.vector_store %arg15[%c0_52, %c0_53, %c0_54], %101 {strides = array<i32>} : memref<1x8x32xf32, #tpu.memory_space<vmem>>, vector<1x8x32xf32>,
    return
  }
  func.func @transform_0(%arg0: i32, %arg1: i32) -> (i32, i32, i32) {
    %c0_i32 = arith.constant 0 : i32
    %c0_i32_0 = arith.constant 0 : i32
    return %arg0, %arg1, %c0_i32 : i32, i32, i32
  }
  func.func @transform_1(%arg0: i32, %arg1: i32) -> (i32, i32, i32, i32) {
    %c0_i32 = arith.constant 0 : i32
    %c0_i32_0 = arith.constant 0 : i32
    %c0_i32_1 = arith.constant 0 : i32
    %c0_i32_2 = arith.constant 0 : i32
    return %arg0, %c0_i32, %c0_i32_0, %c0_i32_1 : i32, i32, i32, i32
  }
  func.func @transform_2(%arg0: i32, %arg1: i32) -> (i32, i32, i32, i32) {
    %c0_i32 = arith.constant 0 : i32
    %c0_i32_0 = arith.constant 0 : i32
    %c0_i32_1 = arith.constant 0 : i32
    %c0_i32_2 = arith.constant 0 : i32
    return %arg0, %c0_i32, %c0_i32_0, %c0_i32_1 : i32, i32, i32, i32
  }
  func.func @transform_3(%arg0: i32, %arg1: i32) -> (i32, i32) {
    %c0_i32 = arith.constant 0 : i32
    %c0_i32_0 = arith.constant 0 : i32
    %c0_i32_1 = arith.constant 0 : i32
    return %c0_i32, %c0_i32_0 : i32, i32
  }
  func.func @transform_4(%arg0: i32, %arg1: i32) -> (i32, i32) {
    %c0_i32 = arith.constant 0 : i32
    %c0_i32_0 = arith.constant 0 : i32
    %c0_i32_1 = arith.constant 0 : i32
    return %c0_i32, %c0_i32_0 : i32, i32
  }
  func.func @transform_5(%arg0: i32, %arg1: i32) -> (i32, i32) {
    %c0_i32 = arith.constant 0 : i32
    %c0_i32_0 = arith.constant 0 : i32
    %c0_i32_1 = arith.constant 0 : i32
    return %c0_i32, %c0_i32_0 : i32, i32
  }
  func.func @transform_6(%arg0: i32, %arg1: i32) -> (i32, i32) {
    %c0_i32 = arith.constant 0 : i32
    %c0_i32_0 = arith.constant 0 : i32
    %c0_i32_1 = arith.constant 0 : i32
    return %c0_i32, %c0_i32_0 : i32, i32
  }
  func.func @transform_7(%arg0: i32, %arg1: i32) -> (i32, i32) {
    %c0_i32 = arith.constant 0 : i32
    %c0_i32_0 = arith.constant 0 : i32
    %c0_i32_1 = arith.constant 0 : i32
    return %c0_i32, %c0_i32_0 : i32, i32
  }
  func.func @transform_8(%arg0: i32, %arg1: i32) -> (i32, i32) {
    %c0_i32 = arith.constant 0 : i32
    %c0_i32_0 = arith.constant 0 : i32
    %c0_i32_1 = arith.constant 0 : i32
    return %c0_i32, %c0_i32_0 : i32, i32
  }
  func.func @transform_9(%arg0: i32, %arg1: i32) -> (i32, i32) {
    %c0_i32 = arith.constant 0 : i32
    %c0_i32_0 = arith.constant 0 : i32
    %c0_i32_1 = arith.constant 0 : i32
    return %c0_i32, %c0_i32_0 : i32, i32
  }
  func.func @transform_10(%arg0: i32, %arg1: i32) -> (i32, i32) {
    %c0_i32 = arith.constant 0 : i32
    %c0_i32_0 = arith.constant 0 : i32
    %c0_i32_1 = arith.constant 0 : i32
    return %c0_i32, %c0_i32_0 : i32, i32
  }
  func.func @transform_11(%arg0: i32, %arg1: i32) -> (i32, i32) {
    %c0_i32 = arith.constant 0 : i32
    %c0_i32_0 = arith.constant 0 : i32
    %c0_i32_1 = arith.constant 0 : i32
    return %c0_i32, %c0_i32_0 : i32, i32
  }
  func.func @transform_12(%arg0: i32, %arg1: i32) -> (i32, i32) {
    %c0_i32 = arith.constant 0 : i32
    %c0_i32_0 = arith.constant 0 : i32
    %c0_i32_1 = arith.constant 0 : i32
    return %c0_i32, %c0_i32_0 : i32, i32
  }
  func.func @transform_13(%arg0: i32, %arg1: i32) -> (i32, i32, i32) {
    %c0_i32 = arith.constant 0 : i32
    %c0_i32_0 = arith.constant 0 : i32
    return %arg0, %arg1, %c0_i32 : i32, i32, i32
  }
  func.func @transform_14(%arg0: i32, %arg1: i32) -> (i32, i32, i32, i32) {
    %c0_i32 = arith.constant 0 : i32
    %c0_i32_0 = arith.constant 0 : i32
    %c0_i32_1 = arith.constant 0 : i32
    return %arg0, %c0_i32, %arg1, %c0_i32_0 : i32, i32, i32, i32
  }
}

</mosaic_0001>

<llo_original>
// kernel: tpu_custom_call.1
$region0: #{tpu_custom_call.1}
  #allocation0 [shape = 'u32[]', space=smem, size = 0x4, offset = 0x4, fixed_abs, tag = 'smem constant byte address 0x4 - core index']
  #allocation1 [shape = 'u32[144,128]{1,0:T(1,128)}', space=vmem, size = 0x12000, scoped, tag = 'internal scratch']
  %s0 = inlined_call_operand.hbm [shape: f32[2,8,32], index: 0, kind: input, shape index: {}]
  %s1 = inlined_call_operand.vmem [shape: f32[2,4,8,8], index: 1, kind: input, shape index: {}]
  %s2 = inlined_call_operand.hbm [shape: f32[2,4,8,8], index: 2, kind: input, shape index: {}]
  %s3 = inlined_call_operand.vmem [shape: f32[32,32], index: 3, kind: input, shape index: {}]
  %s4 = inlined_call_operand.hbm [shape: f32[32,32], index: 4, kind: input, shape index: {}]
  %s5 = inlined_call_operand.vmem [shape: f32[1,32], index: 5, kind: input, shape index: {}]
  %s6 = inlined_call_operand.vmem [shape: f32[1,32], index: 6, kind: input, shape index: {}]
  %s7 = inlined_call_operand.hbm [shape: f32[32,64], index: 7, kind: input, shape index: {}]
  %s8 = inlined_call_operand.vmem [shape: f32[1,64], index: 8, kind: input, shape index: {}]
  %s9 = inlined_call_operand.vmem [shape: f32[64,32], index: 9, kind: input, shape index: {}]
  %s10 = inlined_call_operand.vmem [shape: f32[1,32], index: 10, kind: input, shape index: {}]
  %s11 = inlined_call_operand.vmem [shape: f32[1,32], index: 11, kind: input, shape index: {}]
  %s12 = inlined_call_operand.vmem [shape: f32[1,32], index: 12, kind: input, shape index: {}]
  %s13 = inlined_call_operand.hbm [shape: f32[2,8,32], index: 13, kind: output, shape index: {0}]
  %s14 = inlined_call_operand.hbm [shape: f32[2,4,8,8], index: 14, kind: output, shape index: {1}]
  %15 = xla_tuple %s13, %s14
  %s16 = sld [smem:[#allocation0]]
  $region109: #{tpu_custom_call.1} parent=0
    _
  %s18 = ssub.s32 1, %s16
  %s19 = scalar_select 0, %s18, %s16
  $region1: #{tpu_custom_call.1} parent=0
    #allocation2 [shape = 'u8[8192]{0}', space=vmem, size = 0x2000, scoped, tag = 'input window, operand 0']
    #allocation3 [shape = 's32[2]{0}', space=sflag, size = 0x8, scoped, tag = 'scoped memory for tpu_custom_call.1']
    #allocation4 [shape = 's32[2]{0}', space=sflag, size = 0x8, scoped, tag = 'scoped memory for tpu_custom_call.1']
    #allocation5 [shape = 'u8[32768]{0}', space=vmem, size = 0x8000, scoped, tag = 'input window, operand 2']
    #allocation6 [shape = 's32[2]{0}', space=sflag, size = 0x8, scoped, tag = 'scoped memory for tpu_custom_call.1']
    #allocation7 [shape = 'u8[16384]{0}', space=vmem, size = 0x4000, scoped, tag = 'input window, operand 4, single buffered']
    #allocation8 [shape = 'u8[16384]{0}', space=vmem, size = 0x4000, scoped, tag = 'input window, operand 7, single buffered']
    #allocation9 [shape = 's32[1]{0}', space=sflag, size = 0x4, scoped, tag = 'scoped memory for tpu_custom_call.1']
    #allocation10 [shape = 'u8[8192]{0}', space=vmem, size = 0x2000, scoped, tag = 'output window, operand 0']
    #allocation11 [shape = 'u8[32768]{0}', space=vmem, size = 0x8000, scoped, tag = 'output window, operand 1']
    #allocation12 [shape = 's32[2]{0}', space=sflag, size = 0x8, scoped, tag = 'scoped memory for tpu_custom_call.1']
    %20 = vsyncpa [#allocation3], 0
    %s21 = scalar_lea.sflag [#allocation3], 1
    %22 = vsyncpa %s21, 0
    %23 = vsyncpa [#allocation6], 0
    %s24 = scalar_lea.sflag [#allocation6], 1
    %25 = vsyncpa %s24, 0
    %26 = vsyncpa [#allocation9], 0
    %27 = vsyncpa [#allocation4], 0
    %s28 = scalar_lea.sflag [#allocation4], 1
    %29 = vsyncpa %s28, 0
    %30 = vsyncpa [#allocation12], 0
    %s31 = scalar_lea.sflag [#allocation12], 1
    %32 = vsyncpa %s31, 0
    loop: start=0, step=1, limit=4
    $region2: #{tpu_custom_call.1} parent=1 // loop_pre_header
      _
    $region3: #{tpu_custom_call.1} parent=1 // loop_header
      %s34 = sphi 0, %s38
      %p35 = scmp.ge.s32.totalorder %s34, 4
      %s41 = sphi 0, %s53
      %s42 = sphi 0, %s49
      %s43 = sphi 0, %s41
      %s44 = sphi 0, %s42
      %s45 = sphi 0, %s43
      %s46 = sphi 0, %s44
      %s58 = sphi 0, %s60
      %s61 = sphi 0, %s58
      %s62 = sphi 0, %s61
      %s78 = sphi 0, %s62
      %s84 = sphi 0, %s86
      %s87 = sphi 0, %s84
      %s88 = sphi 0, %s87
      %s104 = sphi 0, %s88
      %s110 = sphi 0, %s112
      %s113 = sphi 0, %s110
      %s114 = sphi 0, %s113
      %s130 = sphi 0, %s114
      %s134 = sphi 0, %s134
      %s136 = sphi 0, %s134
      %s137 = sphi 0, %s136
      %s151 = sphi 0, %s137
      %s155 = sphi 0, %s155
      %s157 = sphi 0, %s155
      %s158 = sphi 0, %s157
      %s172 = sphi 0, %s158
      %s176 = sphi 0, %s176
      %s178 = sphi 0, %s176
      %s179 = sphi 0, %s178
      %s193 = sphi 0, %s179
      %s197 = sphi 0, %s197
      %s199 = sphi 0, %s197
      %s200 = sphi 0, %s199
      %s214 = sphi 0, %s200
      %s218 = sphi 0, %s218
      %s220 = sphi 0, %s218
      %s221 = sphi 0, %s220
      %s235 = sphi 0, %s221
      %s239 = sphi 0, %s239
      %s241 = sphi 0, %s239
      %s242 = sphi 0, %s241
      %s256 = sphi 0, %s242
      %s260 = sphi 0, %s260
      %s262 = sphi 0, %s260
      %s263 = sphi 0, %s262
      %s277 = sphi 0, %s263
      %s281 = sphi 0, %s281
      %s283 = sphi 0, %s281
      %s284 = sphi 0, %s283
      %s298 = sphi 0, %s284
      %s302 = sphi 0, %s302
      %s304 = sphi 0, %s302
      %s305 = sphi 0, %s304
      %s319 = sphi 0, %s305
      %s323 = sphi 0, %s323
      %s325 = sphi 0, %s323
      %s326 = sphi 0, %s325
      %s340 = sphi 0, %s326
      %s348 = sphi 0, %s350
      %s351 = sphi 0, %s348
      %s352 = sphi 0, %s351
      %s368 = sphi 0, %s352
      %s376 = sphi 0, %s378
      %s379 = sphi 0, %s376
      %s380 = sphi 0, %s379
      %s396 = sphi 0, %s380
    $region4: #{tpu_custom_call.1} parent=1 // loop_header_branch
      %37 = sbr.rel (%p35) target = $region8
    $region5: #{tpu_custom_call.1} parent=1 // loop_body
      %s39 = ssub.s32 %s34, 1
      %s40 = ssub.s32 %s34, 2
      %s47 = sadd.s32 1, %s42
      %p48 = scmp.ge.s32.totalorder %s47, 1
      %s49 = scalar_select %p48, 0, %s47
      %s50 = sadd.s32 1, %s41
      %s51 = scalar_select %p48, %s50, %s41
      %p52 = scmp.ge.s32.totalorder %s51, 2
      %s53 = scalar_select %p52, 0, %s51
      %s54 = ssub.s32 %s41, %s53
      %s55 = ssub.s32 %s42, %s49
      %s56 = sor.u32 %s54, %s55
      %p57 = scmp.eq.s32.totalorder %s56, 0
      %s59 = sadd.s32 %s58, 1
      %s60 = scalar_select %p57, %s58, %s59
      %p63 = pneg %p57
      %p64 = scmp.eq.s32.totalorder %s34, 1
      %p65 = por %p63, %p64
      %p66 = scmp.ne.s32.totalorder %s58, %s61
      %p67 = scmp.eq.s32.totalorder %s34, 0
      %p68 = por %p66, %p67
      %p69 = scmp.ne.s32.totalorder %s58, %s61
      %p70 = scmp.eq.s32.totalorder %s39, 1
      %p71 = por %p69, %p70
      %p72 = scmp.ne.s32.totalorder %s61, %s62
      %p73 = scmp.eq.s32.totalorder %s39, 0
      %p74 = por %p72, %p73
      %p75 = scmp.ne.s32.totalorder %s61, %s62
      %p76 = scmp.eq.s32.totalorder %s40, 1
      %p77 = por %p75, %p76
      %p79 = scmp.ne.s32.totalorder %s62, %s78
      %p80 = scmp.eq.s32.totalorder %s40, 0
      %p81 = por %p79, %p80
      %s82 = ssub.s32 %s41, %s53
      %p83 = scmp.eq.s32.totalorder %s82, 0
      %s85 = sadd.s32 %s84, 1
      %s86 = scalar_select %p83, %s84, %s85
      %p89 = pneg %p83
      %p90 = scmp.eq.s32.totalorder %s34, 1
      %p91 = por %p89, %p90
      %p92 = scmp.ne.s32.totalorder %s84, %s87
      %p93 = scmp.eq.s32.totalorder %s34, 0
      %p94 = por %p92, %p93
      %p95 = scmp.ne.s32.totalorder %s84, %s87
      %p96 = scmp.eq.s32.totalorder %s39, 1
      %p97 = por %p95, %p96
      %p98 = scmp.ne.s32.totalorder %s87, %s88
      %p99 = scmp.eq.s32.totalorder %s39, 0
      %p100 = por %p98, %p99
      %p101 = scmp.ne.s32.totalorder %s87, %s88
      %p102 = scmp.eq.s32.totalorder %s40, 1
      %p103 = por %p101, %p102
      %p105 = scmp.ne.s32.totalorder %s88, %s104
      %p106 = scmp.eq.s32.totalorder %s40, 0
      %p107 = por %p105, %p106
      %s108 = ssub.s32 %s41, %s53
      %p109 = scmp.eq.s32.totalorder %s108, 0
      %s111 = sadd.s32 %s110, 1
      %s112 = scalar_select %p109, %s110, %s111
      %p115 = pneg %p109
      %p116 = scmp.eq.s32.totalorder %s34, 1
      %p117 = por %p115, %p116
      %p118 = scmp.ne.s32.totalorder %s110, %s113
      %p119 = scmp.eq.s32.totalorder %s34, 0
      %p120 = por %p118, %p119
      %p121 = scmp.ne.s32.totalorder %s110, %s113
      %p122 = scmp.eq.s32.totalorder %s39, 1
      %p123 = por %p121, %p122
      %p124 = scmp.ne.s32.totalorder %s113, %s114
      %p125 = scmp.eq.s32.totalorder %s39, 0
      %p126 = por %p124, %p125
      %p127 = scmp.ne.s32.totalorder %s113, %s114
      %p128 = scmp.eq.s32.totalorder %s40, 1
      %p129 = por %p127, %p128
      %p131 = scmp.ne.s32.totalorder %s114, %s130
      %p132 = scmp.eq.s32.totalorder %s40, 0
      %p133 = por %p131, %p132
      %s135 = sadd.s32 %s134, 1
      %p138 = scmp.eq.s32.totalorder %s34, 1
      %p139 = scmp.ne.s32.totalorder %s134, %s136
      %p140 = scmp.eq.s32.totalorder %s34, 0
      %p141 = por %p139, %p140
      %p142 = scmp.ne.s32.totalorder %s134, %s136
      %p143 = scmp.eq.s32.totalorder %s39, 1
      %p144 = por %p142, %p143
      %p145 = scmp.ne.s32.totalorder %s136, %s137
      %p146 = scmp.eq.s32.totalorder %s39, 0
      %p147 = por %p145, %p146
      %p148 = scmp.ne.s32.totalorder %s136, %s137
      %p149 = scmp.eq.s32.totalorder %s40, 1
      %p150 = por %p148, %p149
      %p152 = scmp.ne.s32.totalorder %s137, %s151
      %p153 = scmp.eq.s32.totalorder %s40, 0
      %p154 = por %p152, %p153
      %s156 = sadd.s32 %s155, 1
      %p159 = scmp.eq.s32.totalorder %s34, 1
      %p160 = scmp.ne.s32.totalorder %s155, %s157
      %p161 = scmp.eq.s32.totalorder %s34, 0
      %p162 = por %p160, %p161
      %p163 = scmp.ne.s32.totalorder %s155, %s157
      %p164 = scmp.eq.s32.totalorder %s39, 1
      %p165 = por %p163, %p164
      %p166 = scmp.ne.s32.totalorder %s157, %s158
      %p167 = scmp.eq.s32.totalorder %s39, 0
      %p168 = por %p166, %p167
      %p169 = scmp.ne.s32.totalorder %s157, %s158
      %p170 = scmp.eq.s32.totalorder %s40, 1
      %p171 = por %p169, %p170
      %p173 = scmp.ne.s32.totalorder %s158, %s172
      %p174 = scmp.eq.s32.totalorder %s40, 0
      %p175 = por %p173, %p174
      %s177 = sadd.s32 %s176, 1
      %p180 = scmp.eq.s32.totalorder %s34, 1
      %p181 = scmp.ne.s32.totalorder %s176, %s178
      %p182 = scmp.eq.s32.totalorder %s34, 0
      %p183 = por %p181, %p182
      %p184 = scmp.ne.s32.totalorder %s176, %s178
      %p185 = scmp.eq.s32.totalorder %s39, 1
      %p186 = por %p184, %p185
      %p187 = scmp.ne.s32.totalorder %s178, %s179
      %p188 = scmp.eq.s32.totalorder %s39, 0
      %p189 = por %p187, %p188
      %p190 = scmp.ne.s32.totalorder %s178, %s179
      %p191 = scmp.eq.s32.totalorder %s40, 1
      %p192 = por %p190, %p191
      %p194 = scmp.ne.s32.totalorder %s179, %s193
      %p195 = scmp.eq.s32.totalorder %s40, 0
      %p196 = por %p194, %p195
      %s198 = sadd.s32 %s197, 1
      %p201 = scmp.eq.s32.totalorder %s34, 1
      %p202 = scmp.ne.s32.totalorder %s197, %s199
      %p203 = scmp.eq.s32.totalorder %s34, 0
      %p204 = por %p202, %p203
      %p205 = scmp.ne.s32.totalorder %s197, %s199
      %p206 = scmp.eq.s32.totalorder %s39, 1
      %p207 = por %p205, %p206
      %p208 = scmp.ne.s32.totalorder %s199, %s200
      %p209 = scmp.eq.s32.totalorder %s39, 0
      %p210 = por %p208, %p209
      %p211 = scmp.ne.s32.totalorder %s199, %s200
      %p212 = scmp.eq.s32.totalorder %s40, 1
      %p213 = por %p211, %p212
      %p215 = scmp.ne.s32.totalorder %s200, %s214
      %p216 = scmp.eq.s32.totalorder %s40, 0
      %p217 = por %p215, %p216
      %s219 = sadd.s32 %s218, 1
      %p222 = scmp.eq.s32.totalorder %s34, 1
      %p223 = scmp.ne.s32.totalorder %s218, %s220
      %p224 = scmp.eq.s32.totalorder %s34, 0
      %p225 = por %p223, %p224
      %p226 = scmp.ne.s32.totalorder %s218, %s220
      %p227 = scmp.eq.s32.totalorder %s39, 1
      %p228 = por %p226, %p227
      %p229 = scmp.ne.s32.totalorder %s220, %s221
      %p230 = scmp.eq.s32.totalorder %s39, 0
      %p231 = por %p229, %p230
      %p232 = scmp.ne.s32.totalorder %s220, %s221
      %p233 = scmp.eq.s32.totalorder %s40, 1
      %p234 = por %p232, %p233
      %p236 = scmp.ne.s32.totalorder %s221, %s235
      %p237 = scmp.eq.s32.totalorder %s40, 0
      %p238 = por %p236, %p237
      %s240 = sadd.s32 %s239, 1
      %p243 = scmp.eq.s32.totalorder %s34, 1
      %p244 = scmp.ne.s32.totalorder %s239, %s241
      %p245 = scmp.eq.s32.totalorder %s34, 0
      %p246 = por %p244, %p245
      %p247 = scmp.ne.s32.totalorder %s239, %s241
      %p248 = scmp.eq.s32.totalorder %s39, 1
      %p249 = por %p247, %p248
      %p250 = scmp.ne.s32.totalorder %s241, %s242
      %p251 = scmp.eq.s32.totalorder %s39, 0
      %p252 = por %p250, %p251
      %p253 = scmp.ne.s32.totalorder %s241, %s242
      %p254 = scmp.eq.s32.totalorder %s40, 1
      %p255 = por %p253, %p254
      %p257 = scmp.ne.s32.totalorder %s242, %s256
      %p258 = scmp.eq.s32.totalorder %s40, 0
      %p259 = por %p257, %p258
      %s261 = sadd.s32 %s260, 1
      %p264 = scmp.eq.s32.totalorder %s34, 1
      %p265 = scmp.ne.s32.totalorder %s260, %s262
      %p266 = scmp.eq.s32.totalorder %s34, 0
      %p267 = por %p265, %p266
      %p268 = scmp.ne.s32.totalorder %s260, %s262
      %p269 = scmp.eq.s32.totalorder %s39, 1
      %p270 = por %p268, %p269
      %p271 = scmp.ne.s32.totalorder %s262, %s263
      %p272 = scmp.eq.s32.totalorder %s39, 0
      %p273 = por %p271, %p272
      %p274 = scmp.ne.s32.totalorder %s262, %s263
      %p275 = scmp.eq.s32.totalorder %s40, 1
      %p276 = por %p274, %p275
      %p278 = scmp.ne.s32.totalorder %s263, %s277
      %p279 = scmp.eq.s32.totalorder %s40, 0
      %p280 = por %p278, %p279
      %s282 = sadd.s32 %s281, 1
      %p285 = scmp.eq.s32.totalorder %s34, 1
      %p286 = scmp.ne.s32.totalorder %s281, %s283
      %p287 = scmp.eq.s32.totalorder %s34, 0
      %p288 = por %p286, %p287
      %p289 = scmp.ne.s32.totalorder %s281, %s283
      %p290 = scmp.eq.s32.totalorder %s39, 1
      %p291 = por %p289, %p290
      %p292 = scmp.ne.s32.totalorder %s283, %s284
      %p293 = scmp.eq.s32.totalorder %s39, 0
      %p294 = por %p292, %p293
      %p295 = scmp.ne.s32.totalorder %s283, %s284
      %p296 = scmp.eq.s32.totalorder %s40, 1
      %p297 = por %p295, %p296
      %p299 = scmp.ne.s32.totalorder %s284, %s298
      %p300 = scmp.eq.s32.totalorder %s40, 0
      %p301 = por %p299, %p300
      %s303 = sadd.s32 %s302, 1
      %p306 = scmp.eq.s32.totalorder %s34, 1
      %p307 = scmp.ne.s32.totalorder %s302, %s304
      %p308 = scmp.eq.s32.totalorder %s34, 0
      %p309 = por %p307, %p308
      %p310 = scmp.ne.s32.totalorder %s302, %s304
      %p311 = scmp.eq.s32.totalorder %s39, 1
      %p312 = por %p310, %p311
      %p313 = scmp.ne.s32.totalorder %s304, %s305
      %p314 = scmp.eq.s32.totalorder %s39, 0
      %p315 = por %p313, %p314
      %p316 = scmp.ne.s32.totalorder %s304, %s305
      %p317 = scmp.eq.s32.totalorder %s40, 1
      %p318 = por %p316, %p317
      %p320 = scmp.ne.s32.totalorder %s305, %s319
      %p321 = scmp.eq.s32.totalorder %s40, 0
      %p322 = por %p320, %p321
      %s324 = sadd.s32 %s323, 1
      %p327 = scmp.eq.s32.totalorder %s34, 1
      %p328 = scmp.ne.s32.totalorder %s323, %s325
      %p329 = scmp.eq.s32.totalorder %s34, 0
      %p330 = por %p328, %p329
      %p331 = scmp.ne.s32.totalorder %s323, %s325
      %p332 = scmp.eq.s32.totalorder %s39, 1
      %p333 = por %p331, %p332
      %p334 = scmp.ne.s32.totalorder %s325, %s326
      %p335 = scmp.eq.s32.totalorder %s39, 0
      %p336 = por %p334, %p335
      %p337 = scmp.ne.s32.totalorder %s325, %s326
      %p338 = scmp.eq.s32.totalorder %s40, 1
      %p339 = por %p337, %p338
      %p341 = scmp.ne.s32.totalorder %s326, %s340
      %p342 = scmp.eq.s32.totalorder %s40, 0
      %p343 = por %p341, %p342
      %s344 = ssub.s32 %s41, %s53
      %s345 = ssub.s32 %s42, %s49
      %s346 = sor.u32 %s344, %s345
      %p347 = scmp.eq.s32.totalorder %s346, 0
      %s349 = sadd.s32 %s348, 1
      %s350 = scalar_select %p347, %s348, %s349
      %p353 = pneg %p347
      %p354 = scmp.eq.s32.totalorder %s34, 1
      %p355 = por %p353, %p354
      %p356 = scmp.ne.s32.totalorder %s348, %s351
      %p357 = scmp.eq.s32.totalorder %s34, 0
      %p358 = por %p356, %p357
      %p359 = scmp.ne.s32.totalorder %s348, %s351
      %p360 = scmp.eq.s32.totalorder %s39, 1
      %p361 = por %p359, %p360
      %p362 = scmp.ne.s32.totalorder %s351, %s352
      %p363 = scmp.eq.s32.totalorder %s39, 0
      %p364 = por %p362, %p363
      %p365 = scmp.ne.s32.totalorder %s351, %s352
      %p366 = scmp.eq.s32.totalorder %s40, 1
      %p367 = por %p365, %p366
      %p369 = scmp.ne.s32.totalorder %s352, %s368
      %p370 = scmp.eq.s32.totalorder %s40, 0
      %p371 = por %p369, %p370
      %s372 = ssub.s32 %s41, %s53
      %s373 = ssub.s32 %s42, %s49
      %s374 = sor.u32 %s372, %s373
      %p375 = scmp.eq.s32.totalorder %s374, 0
      %s377 = sadd.s32 %s376, 1
      %s378 = scalar_select %p375, %s376, %s377
      %p381 = pneg %p375
      %p382 = scmp.eq.s32.totalorder %s34, 1
      %p383 = por %p381, %p382
      %p384 = scmp.ne.s32.totalorder %s376, %s379
      %p385 = scmp.eq.s32.totalorder %s34, 0
      %p386 = por %p384, %p385
      %p387 = scmp.ne.s32.totalorder %s376, %s379
      %p388 = scmp.eq.s32.totalorder %s39, 1
      %p389 = por %p387, %p388
      %p390 = scmp.ne.s32.totalorder %s379, %s380
      %p391 = scmp.eq.s32.totalorder %s39, 0
      %p392 = por %p390, %p391
      %p393 = scmp.ne.s32.totalorder %s379, %s380
      %p394 = scmp.eq.s32.totalorder %s40, 1
      %p395 = por %p393, %p394
      %p397 = scmp.ne.s32.totalorder %s380, %s396
      %p398 = scmp.eq.s32.totalorder %s40, 0
      %p399 = por %p397, %p398
      %p400 = scmp.le.s32.totalorder 1, %s34
      %p401 = scmp.lt.s32.totalorder %s34, 3
      %p402 = pnand %p400, %p401
      %p403 = pneg %p402
      // Predicated region
      $region9: #{tpu_custom_call.1} parent=5 // pred_check
        _
      $region10: #{tpu_custom_call.1} parent=5 // pred_check_branch
        %405 = sbr.rel (%p402) target = $region12
      $region11: #{tpu_custom_call.1} parent=5 // pred_region
        %s406 = ssub.s32 %s34, 1
        // Predicated region
        $region13: #{tpu_custom_call.1} parent=11 // pred_check
          %p407 = pneg %p147
        $region14: #{tpu_custom_call.1} parent=11 // pred_check_branch
          %409 = sbr.rel (%p407) target = $region16
        $region15: #{tpu_custom_call.1} parent=11 // pred_region
          _
        $region16: #{tpu_custom_call.1} parent=11 // pred_fallthru
          _
        // Predicated region
        $region17: #{tpu_custom_call.1} parent=11 // pred_check
          %p410 = pneg %p168
        $region18: #{tpu_custom_call.1} parent=11 // pred_check_branch
          %412 = sbr.rel (%p410) target = $region20
        $region19: #{tpu_custom_call.1} parent=11 // pred_region
          %s414 = ssub.s32 512, 512
          %415 = vsyncadd [#allocation6], %s414
          %s416 = sshll.u32 [#allocation7], 4
          %s417 = int_to_ptr.vmem [resolvable:$true] %s416
          %422 = dma.hbm_to_vmem [thread:$0]  %s4, 512, %s417, [#allocation6], 128, 128, 8
        $region20: #{tpu_custom_call.1} parent=11 // pred_fallthru
          _
        // Predicated region
        $region21: #{tpu_custom_call.1} parent=11 // pred_check
          %p423 = pneg %p189
        $region22: #{tpu_custom_call.1} parent=11 // pred_check_branch
          %425 = sbr.rel (%p423) target = $region24
        $region23: #{tpu_custom_call.1} parent=11 // pred_region
          _
        $region24: #{tpu_custom_call.1} parent=11 // pred_fallthru
          _
        // Predicated region
        $region25: #{tpu_custom_call.1} parent=11 // pred_check
          %p426 = pneg %p210
        $region26: #{tpu_custom_call.1} parent=11 // pred_check_branch
          %428 = sbr.rel (%p426) target = $region28
        $region27: #{tpu_custom_call.1} parent=11 // pred_region
          _
        $region28: #{tpu_custom_call.1} parent=11 // pred_fallthru
          _
        // Predicated region
        $region29: #{tpu_custom_call.1} parent=11 // pred_check
          %p429 = pneg %p231
        $region30: #{tpu_custom_call.1} parent=11 // pred_check_branch
          %431 = sbr.rel (%p429) target = $region32
        $region31: #{tpu_custom_call.1} parent=11 // pred_region
          %s433 = ssub.s32 512, 512
          %434 = vsyncadd [#allocation9], %s433
          %s435 = sshll.u32 [#allocation8], 4
          %s436 = int_to_ptr.vmem [resolvable:$true] %s435
          %441 = dma.hbm_to_vmem [thread:$0]  %s7, 512, %s436, [#allocation9], 128, 128, 8
        $region32: #{tpu_custom_call.1} parent=11 // pred_fallthru
          _
        // Predicated region
        $region33: #{tpu_custom_call.1} parent=11 // pred_check
          %p442 = pneg %p252
        $region34: #{tpu_custom_call.1} parent=11 // pred_check_branch
          %444 = sbr.rel (%p442) target = $region36
        $region35: #{tpu_custom_call.1} parent=11 // pred_region
          _
        $region36: #{tpu_custom_call.1} parent=11 // pred_fallthru
          _
        // Predicated region
        $region37: #{tpu_custom_call.1} parent=11 // pred_check
          %p445 = pneg %p273
        $region38: #{tpu_custom_call.1} parent=11 // pred_check_branch
          %447 = sbr.rel (%p445) target = $region40
        $region39: #{tpu_custom_call.1} parent=11 // pred_region
          _
        $region40: #{tpu_custom_call.1} parent=11 // pred_fallthru
          _
        // Predicated region
        $region41: #{tpu_custom_call.1} parent=11 // pred_check
          %p448 = pneg %p294
        $region42: #{tpu_custom_call.1} parent=11 // pred_check_branch
          %450 = sbr.rel (%p448) target = $region44
        $region43: #{tpu_custom_call.1} parent=11 // pred_region
          _
        $region44: #{tpu_custom_call.1} parent=11 // pred_fallthru
          _
        // Predicated region
        $region45: #{tpu_custom_call.1} parent=11 // pred_check
          %p451 = pneg %p315
        $region46: #{tpu_custom_call.1} parent=11 // pred_check_branch
          %453 = sbr.rel (%p451) target = $region48
        $region47: #{tpu_custom_call.1} parent=11 // pred_region
          _
        $region48: #{tpu_custom_call.1} parent=11 // pred_fallthru
          _
        // Predicated region
        $region49: #{tpu_custom_call.1} parent=11 // pred_check
          %p454 = pneg %p336
        $region50: #{tpu_custom_call.1} parent=11 // pred_check_branch
          %456 = sbr.rel (%p454) target = $region52
        $region51: #{tpu_custom_call.1} parent=11 // pred_region
          _
        $region52: #{tpu_custom_call.1} parent=11 // pred_fallthru
          _
      $region12: #{tpu_custom_call.1} parent=5 // pred_fallthru
        _
      %p457 = scmp.lt.s32.totalorder %s34, 2
      // Predicated region
      $region53: #{tpu_custom_call.1} parent=5 // pred_check
        %p458 = pneg %p457
      $region54: #{tpu_custom_call.1} parent=5 // pred_check_branch
        %460 = sbr.rel (%p458) target = $region56
      $region55: #{tpu_custom_call.1} parent=5 // pred_region
        // Predicated region
        $region57: #{tpu_custom_call.1} parent=55 // pred_check
          %p461 = pneg %p68
        $region58: #{tpu_custom_call.1} parent=55 // pred_check_branch
          %463 = sbr.rel (%p461) target = $region60
        $region59: #{tpu_custom_call.1} parent=55 // pred_region
          %s464 = sand.u32 %s58, 1
          %s465 = scalar_lea.sflag [#allocation3], %s464
          %s466 = sand.u32 %s58, 1
          %s467 = smul.addr %s466, 8
          %s468 = scalar_lea.vmem [#allocation2], %s467
          %s470 = ssub.s32 128, 128
          %471 = vsyncadd %s465, %s470
          %s472 = sadd.s32 %s42, %s41
          %s473 = smul.addr %s472, 128
          %s474 = scalar_lea.hbm %s0, %s473
          %s476 = sshll.u32 %s468, 4
          %s477 = int_to_ptr.vmem [resolvable:$true] %s476
          %479 = dma.hbm_to_vmem [thread:$0]  %s474, 128, %s477, %s465
        $region60: #{tpu_custom_call.1} parent=55 // pred_fallthru
          _
        // Predicated region
        $region61: #{tpu_custom_call.1} parent=55 // pred_check
          %p480 = pneg %p94
        $region62: #{tpu_custom_call.1} parent=55 // pred_check_branch
          %482 = sbr.rel (%p480) target = $region64
        $region63: #{tpu_custom_call.1} parent=55 // pred_region
          %p483 = scmp.lt.s32.totalorder %s41, 1
          %s484 = scalar_select %p483, %s41, 1
          %s485 = smul.addr %s484, 4
          %s486 = smul.addr %s485, 8
          %s487 = scalar_lea.vmem %s1, %s486
        $region64: #{tpu_custom_call.1} parent=55 // pred_fallthru
          _
        // Predicated region
        $region65: #{tpu_custom_call.1} parent=55 // pred_check
          %p488 = pneg %p120
        $region66: #{tpu_custom_call.1} parent=55 // pred_check_branch
          %490 = sbr.rel (%p488) target = $region68
        $region67: #{tpu_custom_call.1} parent=55 // pred_region
          %s491 = sand.u32 %s34, 1
          %s492 = scalar_lea.sflag [#allocation6], %s491
          %s493 = sand.u32 %s110, 1
          %s494 = smul.addr %s493, 32
          %s495 = scalar_lea.vmem [#allocation5], %s494
          %s497 = ssub.s32 512, 512
          %498 = vsyncadd %s492, %s497
          %s499 = smul.addr %s41, 4
          %s500 = smul.addr %s499, 128
          %s501 = scalar_lea.hbm %s2, %s500
          %s502 = sshll.u32 %s495, 4
          %s503 = int_to_ptr.vmem [resolvable:$true] %s502
          %508 = dma.hbm_to_vmem [thread:$0]  %s501, 512, %s503, %s492, 128, 128, 8
        $region68: #{tpu_custom_call.1} parent=55 // pred_fallthru
          _
      $region56: #{tpu_custom_call.1} parent=5 // pred_fallthru
        _
      %p509 = scmp.le.s32.totalorder 1, %s34
      %p510 = scmp.lt.s32.totalorder %s34, 3
      %p511 = pnand %p509, %p510
      %p512 = pneg %p511
      // Predicated region
      $region69: #{tpu_custom_call.1} parent=5 // pred_check
        _
      $region70: #{tpu_custom_call.1} parent=5 // pred_check_branch
        %514 = sbr.rel (%p511) target = $region72
      $region71: #{tpu_custom_call.1} parent=5 // pred_region
        %s515 = ssub.s32 %s34, 1
        %s516 = sand.u32 %s61, 1
        %s517 = scalar_lea.sflag [#allocation3], %s516
        %s518 = sand.u32 %s61, 1
        %s519 = smul.addr %s518, 8
        %s520 = scalar_lea.vmem [#allocation2], %s519
        // Predicated region
        $region73: #{tpu_custom_call.1} parent=71 // pred_check
          %p521 = pneg %p74
        $region74: #{tpu_custom_call.1} parent=71 // pred_check_branch
          %523 = sbr.rel (%p521) target = $region76
        $region75: #{tpu_custom_call.1} parent=71 // pred_region
          %524 = dma.done %s517, 128
        $region76: #{tpu_custom_call.1} parent=71 // pred_fallthru
          _
        %s525 = sand.u32 %s39, 1
        %s526 = scalar_lea.sflag [#allocation6], %s525
        %s527 = sand.u32 %s113, 1
        %s528 = smul.addr %s527, 32
        %s529 = scalar_lea.vmem [#allocation5], %s528
        // Predicated region
        $region77: #{tpu_custom_call.1} parent=71 // pred_check
          %p530 = pneg %p126
        $region78: #{tpu_custom_call.1} parent=71 // pred_check_branch
          %532 = sbr.rel (%p530) target = $region80
        $region79: #{tpu_custom_call.1} parent=71 // pred_region
          %533 = dma.done %s526, 512
        $region80: #{tpu_custom_call.1} parent=71 // pred_fallthru
          _
        // Predicated region
        $region81: #{tpu_custom_call.1} parent=71 // pred_check
          %p534 = pneg %p168
        $region82: #{tpu_custom_call.1} parent=71 // pred_check_branch
          %536 = sbr.rel (%p534) target = $region84
        $region83: #{tpu_custom_call.1} parent=71 // pred_region
          %537 = dma.done [#allocation6], 512
        $region84: #{tpu_custom_call.1} parent=71 // pred_fallthru
          _
        // Predicated region
        $region85: #{tpu_custom_call.1} parent=71 // pred_check
          %p538 = pneg %p231
        $region86: #{tpu_custom_call.1} parent=71 // pred_check_branch
          %540 = sbr.rel (%p538) target = $region88
        $region87: #{tpu_custom_call.1} parent=71 // pred_region
          %541 = dma.done [#allocation9], 512
        $region88: #{tpu_custom_call.1} parent=71 // pred_fallthru
          _
        %s542 = sand.u32 %s61, 1
        %s543 = scalar_lea.sflag [#allocation3], %s542
        %s544 = sand.u32 %s61, 1
        %s545 = smul.addr %s544, 8
        %s546 = scalar_lea.vmem [#allocation2], %s545
        %p547 = pneg %p74
        %p548 = pneg %p71
        %p549 = scmp.lt.s32.totalorder %s43, 1
        %s550 = scalar_select %p549, %s43, 1
        %s551 = smul.addr %s550, 4
        %s552 = smul.addr %s551, 8
        %s553 = scalar_lea.vmem %s1, %s552
        %p554 = pneg %p100
        %p555 = pneg %p97
        %s556 = sand.u32 %s39, 1
        %s557 = scalar_lea.sflag [#allocation6], %s556
        %s558 = sand.u32 %s113, 1
        %s559 = smul.addr %s558, 32
        %s560 = scalar_lea.vmem [#allocation5], %s559
        %p561 = pneg %p126
        %p562 = pneg %p123
        %p563 = pneg %p147
        %p564 = pneg %p144
        %p565 = pneg %p168
        %p566 = pneg %p165
        %p567 = pneg %p189
        %p568 = pneg %p186
        %p569 = pneg %p210
        %p570 = pneg %p207
        %p571 = pneg %p231
        %p572 = pneg %p228
        %p573 = pneg %p252
        %p574 = pneg %p249
        %p575 = pneg %p273
        %p576 = pneg %p270
        %p577 = pneg %p294
        %p578 = pneg %p291
        %p579 = pneg %p315
        %p580 = pneg %p312
        %p581 = pneg %p336
        %p582 = pneg %p333
        %p583 = pneg %p364
        %p584 = pneg %p361
        %s585 = sand.u32 %s351, 1
        %s586 = scalar_lea.sflag [#allocation4], %s585
        %s587 = sand.u32 %s351, 1
        %s588 = smul.addr %s587, 8
        %s589 = scalar_lea.vmem [#allocation10], %s588
        %p590 = pneg %p392
        %p591 = pneg %p389
        %s592 = sand.u32 %s379, 1
        %s593 = scalar_lea.sflag [#allocation12], %s592
        %s594 = sand.u32 %s379, 1
        %s595 = smul.addr %s594, 32
        %s596 = scalar_lea.vmem [#allocation11], %s595
        %p597 = scmp.lt.s32.totalorder %s43, 1
        %s598 = scalar_select %p597, %s43, 1
        %s599 = smul.addr %s598, 4
        %s600 = smul.addr %s599, 8
        %s601 = scalar_lea.vmem %s1, %s600
        %v602 = vld [vmem:[%s520] sm:$0xff]
        %v603 = vld [vmem:[%s3] sm:$0xff]
        %v604 = vld [vmem:[%s3 + $0x8] sm:$0xff]
        %v605 = vld [vmem:[%s3 + $0x10] sm:$0xff]
        %v606 = vld [vmem:[%s3 + $0x18] sm:$0xff]
        %vm607 = vcmask 261120
        %v609 = vsel %vm607, %v602, 0
        %611 = vmatprep.subr.mxu0 0.0
        %612 = vmatpush1.msra.mxu0 0.0
        %613 = vmatprep.subr.mxu0 0.0
        %614 = vmatpush1.msra.mxu0 0.0
        %615 = vmatprep.subr.mxu0 0.0
        %616 = vmatpush1.msra.mxu0 0.0
        %617 = vmatprep.subr.mxu0 0.0
        %618 = vmatpush1.msra.mxu0 0.0
        %619 = vmatprep.subr.mxu0 0.0
        %620 = vmatpush1.msra.mxu0 0.0
        %621 = vmatprep.subr.mxu0 0.0
        %622 = vmatpush1.msra.mxu0 0.0
        %623 = vmatprep.subr.mxu0 0.0
        %624 = vmatpush1.msra.mxu0 0.0
        %625 = vmatprep.subr.mxu0 0.0
        %626 = vmatpush1.msra.mxu0 0.0
        %627 = vmatprep.subr.mxu0 0.0
        %628 = vmatpush1.msra.mxu0 0.0
        %629 = vmatprep.subr.mxu0 0.0
        %630 = vmatpush1.msra.mxu0 0.0
        %631 = vmatprep.subr.mxu0 0.0
        %632 = vmatpush1.msra.mxu0 0.0
        %633 = vmatprep.subr.mxu0 0.0
        %634 = vmatpush1.msra.mxu0 0.0
        %635 = vmatprep.subr.mxu0 0.0
        %636 = vmatpush1.msra.mxu0 %v606
        %637 = vmatprep.subr.mxu0 0.0
        %638 = vmatpush1.msra.mxu0 %v605
        %639 = vmatprep.subr.mxu0 0.0
        %640 = vmatpush1.msra.mxu0 %v604
        %641 = vmatprep.subr.mxu0 0.0
        %642 = vmatpush1.msra.mxu0 %v603
        %643 = vmatprep.subr.mxu0 0.0
        %644 = vmatpush2.msra.mxu0 0.0
        %645 = vmatprep.subr.mxu0 0.0
        %646 = vmatpush2.msra.mxu0 0.0
        %647 = vmatprep.subr.mxu0 0.0
        %648 = vmatpush2.msra.mxu0 0.0
        %649 = vmatprep.subr.mxu0 0.0
        %650 = vmatpush2.msra.mxu0 0.0
        %651 = vmatprep.subr.mxu0 0.0
        %652 = vmatpush2.msra.mxu0 0.0
        %653 = vmatprep.subr.mxu0 0.0
        %654 = vmatpush2.msra.mxu0 0.0
        %655 = vmatprep.subr.mxu0 0.0
        %656 = vmatpush2.msra.mxu0 0.0
        %657 = vmatprep.subr.mxu0 0.0
        %658 = vmatpush2.msra.mxu0 0.0
        %659 = vmatprep.subr.mxu0 0.0
        %660 = vmatpush2.msra.mxu0 0.0
        %661 = vmatprep.subr.mxu0 0.0
        %662 = vmatpush2.msra.mxu0 0.0
        %663 = vmatprep.subr.mxu0 0.0
        %664 = vmatpush2.msra.mxu0 0.0
        %665 = vmatprep.subr.mxu0 0.0
        %666 = vmatpush2.msra.mxu0 0.0
        %667 = vmatprep.subr.mxu0 0.0
        %668 = vmatpush2.msra.mxu0 0.0
        %669 = vmatprep.subr.mxu0 0.0
        %670 = vmatpush2.msra.mxu0 0.0
        %671 = vmatprep.subr.mxu0 0.0
        %672 = vmatpush2.msra.mxu0 0.0
        %673 = vmatprep.subr.mxu0 0.0
        %674 = vmatpush2.msra.mxu0 0.0
        %675 = vmatprep.mubr.f32.mxu0 0.0
        %676 = vmatmul.mubr.f32.gmra.mxu0 %v609
        %v677 = vpop.f32.mrf.mxu0
        %v678 = vadd.f32 0.0, %v677
        %v679 = vpop.f32.mrf.mxu0
        %680 = vdwg.mxu0
        %682 = vrot.lane.b32.xlu0 %v678, 120
        %v683 = vpop.permute.xlu0 %682
        %685 = vrot.lane.b32.xlu0 %v678, 112
        %v686 = vpop.permute.xlu0 %685
        %688 = vrot.lane.b32.xlu0 %v678, 104
        %v689 = vpop.permute.xlu0 %688
        %v691 = vcombine.low %v678, %v686
        %v692 = vcombine.high %v678, %v686
        %v694 = vunpack.c.l.s4 1983009808
        %v695 = vunpack.c.0.s8 %v694
        %v696 = vlaneseq
        %v697 = vshrl.u32 %v696, 7
        %v698 = vsub.s32 %v695, %v697
        %v699 = vrot.slane %v691, %v698
        %v701 = vunpack.c.l.s4 1983009808
        %v702 = vunpack.c.0.s8 %v701
        %v703 = vlaneseq
        %v704 = vshrl.u32 %v703, 7
        %v705 = vsub.s32 %v702, %v704
        %v706 = vrot.slane %v692, %v705
        %v707 = vcombine.low %v683, %v689
        %v708 = vcombine.high %v683, %v689
        %v710 = vunpack.c.l.s4 1983009808
        %v711 = vunpack.c.0.s8 %v710
        %v712 = vlaneseq
        %v713 = vshrl.u32 %v712, 7
        %v714 = vsub.s32 %v711, %v713
        %v715 = vrot.slane %v707, %v714
        %v717 = vunpack.c.l.s4 1983009808
        %v718 = vunpack.c.0.s8 %v717
        %v719 = vlaneseq
        %v720 = vshrl.u32 %v719, 7
        %v721 = vsub.s32 %v718, %v720
        %v722 = vrot.slane %v708, %v721
        %v723 = vcombine.low %v699, %v715
        %v724 = vcombine.high %v699, %v715
        %v726 = vunpack.c.l.s4 1934713408
        %v727 = vunpack.c.0.s8 %v726
        %v728 = vlaneseq
        %v729 = vshrl.u32 %v728, 7
        %v730 = vsub.s32 %v727, %v729
        %v731 = vrot.slane %v723, %v730
        %v733 = vunpack.c.l.s4 1934713408
        %v734 = vunpack.c.0.s8 %v733
        %v735 = vlaneseq
        %v736 = vshrl.u32 %v735, 7
        %v737 = vsub.s32 %v734, %v736
        %v738 = vrot.slane %v724, %v737
        %v739 = vcombine.low %v706, %v722
        %v740 = vcombine.high %v706, %v722
        %v742 = vunpack.c.l.s4 1934713408
        %v743 = vunpack.c.0.s8 %v742
        %v744 = vlaneseq
        %v745 = vshrl.u32 %v744, 7
        %v746 = vsub.s32 %v743, %v745
        %v747 = vrot.slane %v739, %v746
        %v749 = vunpack.c.l.s4 1934713408
        %v750 = vunpack.c.0.s8 %v749
        %v751 = vlaneseq
        %v752 = vshrl.u32 %v751, 7
        %v753 = vsub.s32 %v750, %v752
        %v754 = vrot.slane %v740, %v753
        %v755 = vcombine.high %v731, 0.0
        %v756 = vcombine.high %v738, 0.0
        %v757 = vcombine.high %v747, 0.0
        %v758 = vcombine.high %v754, 0.0
        %v759 = vcombine.low %v731, %v738
        %v761 = vunpack.c.l.s4 1983009808
        %v762 = vunpack.c.0.s8 %v761
        %v763 = vlaneseq
        %v764 = vshrl.u32 %v763, 7
        %v765 = vsub.s32 %v762, %v764
        %v766 = vrot.slane %v759, %v765
        %v767 = vcombine.low %v755, %v756
        %v769 = vunpack.c.l.s4 1983009808
        %v770 = vunpack.c.0.s8 %v769
        %v771 = vlaneseq
        %v772 = vshrl.u32 %v771, 7
        %v773 = vsub.s32 %v770, %v772
        %v774 = vrot.slane %v767, %v773
        %v775 = vcombine.low %v747, %v754
        %v777 = vunpack.c.l.s4 1983009808
        %v778 = vunpack.c.0.s8 %v777
        %v779 = vlaneseq
        %v780 = vshrl.u32 %v779, 7
        %v781 = vsub.s32 %v778, %v780
        %v782 = vrot.slane %v775, %v781
        %v783 = vcombine.low %v757, %v758
        %v785 = vunpack.c.l.s4 1983009808
        %v786 = vunpack.c.0.s8 %v785
        %v787 = vlaneseq
        %v788 = vshrl.u32 %v787, 7
        %v789 = vsub.s32 %v786, %v788
        %v790 = vrot.slane %v783, %v789
        %v791 = vcombine.low %v766, %v774
        %v792 = vcombine.high %v766, %v774
        %v794 = vunpack.c.l.s4 1934713408
        %v795 = vunpack.c.0.s8 %v794
        %v796 = vlaneseq
        %v797 = vshrl.u32 %v796, 7
        %v798 = vsub.s32 %v795, %v797
        %v799 = vrot.slane %v791, %v798
        %v801 = vunpack.c.l.s4 1934713408
        %v802 = vunpack.c.0.s8 %v801
        %v803 = vlaneseq
        %v804 = vshrl.u32 %v803, 7
        %v805 = vsub.s32 %v802, %v804
        %v806 = vrot.slane %v792, %v805
        %v807 = vcombine.low %v782, %v790
        %v808 = vcombine.high %v782, %v790
        %v810 = vunpack.c.l.s4 1934713408
        %v811 = vunpack.c.0.s8 %v810
        %v812 = vlaneseq
        %v813 = vshrl.u32 %v812, 7
        %v814 = vsub.s32 %v811, %v813
        %v815 = vrot.slane %v807, %v814
        %v817 = vunpack.c.l.s4 1934713408
        %v818 = vunpack.c.0.s8 %v817
        %v819 = vlaneseq
        %v820 = vshrl.u32 %v819, 7
        %v821 = vsub.s32 %v818, %v820
        %v822 = vrot.slane %v808, %v821
        %v823 = vcombine.low %v799, %v815
        %v824 = vcombine.high %v799, %v815
        %v825 = vcombine.low %v806, %v822
        %v826 = vcombine.high %v806, %v822
        %v827 = vld [vmem:[%s601] sm:$0xff]
        %v828 = vld [vmem:[%s601 + $0x8] sm:$0xff]
        %v829 = vld [vmem:[%s601 + $0x10] sm:$0xff]
        %v830 = vld [vmem:[%s601 + $0x18] sm:$0xff]
        %v831 = vld [vmem:[%s529] sm:$0xff]
        %v832 = vld [vmem:[%s529 + $0x8] sm:$0xff]
        %v833 = vld [vmem:[%s529 + $0x10] sm:$0xff]
        %v834 = vld [vmem:[%s529 + $0x18] sm:$0xff]
        %vm835 = vcmask 64512
        %v837 = vsel %vm835, %v823, 0
        %v840 = vsel %vm835, %v827, 0
        %842 = vmatprep.subr.mxu0 0.0
        %843 = vmatpush1.xpose.msra.mxu0 0.0
        %844 = vmatprep.subr.mxu0 0.0
        %845 = vmatpush1.xpose.msra.mxu0 0.0
        %846 = vmatprep.subr.mxu0 0.0
        %847 = vmatpush1.xpose.msra.mxu0 0.0
        %848 = vmatprep.subr.mxu0 0.0
        %849 = vmatpush1.xpose.msra.mxu0 0.0
        %850 = vmatprep.subr.mxu0 0.0
        %851 = vmatpush1.xpose.msra.mxu0 0.0
        %852 = vmatprep.subr.mxu0 0.0
        %853 = vmatpush1.xpose.msra.mxu0 0.0
        %854 = vmatprep.subr.mxu0 0.0
        %855 = vmatpush1.xpose.msra.mxu0 0.0
        %856 = vmatprep.subr.mxu0 0.0
        %857 = vmatpush1.xpose.msra.mxu0 0.0
        %858 = vmatprep.subr.mxu0 0.0
        %859 = vmatpush1.xpose.msra.mxu0 0.0
        %860 = vmatprep.subr.mxu0 0.0
        %861 = vmatpush1.xpose.msra.mxu0 0.0
        %862 = vmatprep.subr.mxu0 0.0
        %863 = vmatpush1.xpose.msra.mxu0 0.0
        %864 = vmatprep.subr.mxu0 0.0
        %865 = vmatpush1.xpose.msra.mxu0 0.0
        %866 = vmatprep.subr.mxu0 0.0
        %867 = vmatpush1.xpose.msra.mxu0 0.0
        %868 = vmatprep.subr.mxu0 0.0
        %869 = vmatpush1.xpose.msra.mxu0 0.0
        %870 = vmatprep.subr.mxu0 0.0
        %871 = vmatpush1.xpose.msra.mxu0 0.0
        %872 = vmatprep.subr.mxu0 0.0
        %873 = vmatpush1.xpose.msra.mxu0 %v840
        %874 = vmatprep.subr.mxu0 0.0
        %875 = vmatpush2.xpose.msra.mxu0 0.0
        %876 = vmatprep.subr.mxu0 0.0
        %877 = vmatpush2.xpose.msra.mxu0 0.0
        %878 = vmatprep.subr.mxu0 0.0
        %879 = vmatpush2.xpose.msra.mxu0 0.0
        %880 = vmatprep.subr.mxu0 0.0
        %881 = vmatpush2.xpose.msra.mxu0 0.0
        %882 = vmatprep.subr.mxu0 0.0
        %883 = vmatpush2.xpose.msra.mxu0 0.0
        %884 = vmatprep.subr.mxu0 0.0
        %885 = vmatpush2.xpose.msra.mxu0 0.0
        %886 = vmatprep.subr.mxu0 0.0
        %887 = vmatpush2.xpose.msra.mxu0 0.0
        %888 = vmatprep.subr.mxu0 0.0
        %889 = vmatpush2.xpose.msra.mxu0 0.0
        %890 = vmatprep.subr.mxu0 0.0
        %891 = vmatpush2.xpose.msra.mxu0 0.0
        %892 = vmatprep.subr.mxu0 0.0
        %893 = vmatpush2.xpose.msra.mxu0 0.0
        %894 = vmatprep.subr.mxu0 0.0
        %895 = vmatpush2.xpose.msra.mxu0 0.0
        %896 = vmatprep.subr.mxu0 0.0
        %897 = vmatpush2.xpose.msra.mxu0 0.0
        %898 = vmatprep.subr.mxu0 0.0
        %899 = vmatpush2.xpose.msra.mxu0 0.0
        %900 = vmatprep.subr.mxu0 0.0
        %901 = vmatpush2.xpose.msra.mxu0 0.0
        %902 = vmatprep.subr.mxu0 0.0
        %903 = vmatpush2.xpose.msra.mxu0 0.0
        %904 = vmatprep.subr.mxu0 0.0
        %905 = vmatpush2.xpose.msra.mxu0 0.0
        %906 = vmatprep.mubr.f32.mxu0 0.0
        %907 = vmatmul.mubr.f32.gmra.mxu0 %v837
        %v908 = vpop.f32.mrf.mxu0
        %v909 = vadd.f32 0.0, %v908
        %v910 = vpop.f32.mrf.mxu0
        %911 = vdwg.mxu0
        %v913 = vsel %vm835, %v824, 0
        %v916 = vsel %vm835, %v828, 0
        %918 = vmatprep.subr.mxu0 0.0
        %919 = vmatpush1.xpose.msra.mxu0 0.0
        %920 = vmatprep.subr.mxu0 0.0
        %921 = vmatpush1.xpose.msra.mxu0 0.0
        %922 = vmatprep.subr.mxu0 0.0
        %923 = vmatpush1.xpose.msra.mxu0 0.0
        %924 = vmatprep.subr.mxu0 0.0
        %925 = vmatpush1.xpose.msra.mxu0 0.0
        %926 = vmatprep.subr.mxu0 0.0
        %927 = vmatpush1.xpose.msra.mxu0 0.0
        %928 = vmatprep.subr.mxu0 0.0
        %929 = vmatpush1.xpose.msra.mxu0 0.0
        %930 = vmatprep.subr.mxu0 0.0
        %931 = vmatpush1.xpose.msra.mxu0 0.0
        %932 = vmatprep.subr.mxu0 0.0
        %933 = vmatpush1.xpose.msra.mxu0 0.0
        %934 = vmatprep.subr.mxu0 0.0
        %935 = vmatpush1.xpose.msra.mxu0 0.0
        %936 = vmatprep.subr.mxu0 0.0
        %937 = vmatpush1.xpose.msra.mxu0 0.0
        %938 = vmatprep.subr.mxu0 0.0
        %939 = vmatpush1.xpose.msra.mxu0 0.0
        %940 = vmatprep.subr.mxu0 0.0
        %941 = vmatpush1.xpose.msra.mxu0 0.0
        %942 = vmatprep.subr.mxu0 0.0
        %943 = vmatpush1.xpose.msra.mxu0 0.0
        %944 = vmatprep.subr.mxu0 0.0
        %945 = vmatpush1.xpose.msra.mxu0 0.0
        %946 = vmatprep.subr.mxu0 0.0
        %947 = vmatpush1.xpose.msra.mxu0 0.0
        %948 = vmatprep.subr.mxu0 0.0
        %949 = vmatpush1.xpose.msra.mxu0 %v916
        %950 = vmatprep.subr.mxu0 0.0
        %951 = vmatpush2.xpose.msra.mxu0 0.0
        %952 = vmatprep.subr.mxu0 0.0
        %953 = vmatpush2.xpose.msra.mxu0 0.0
        %954 = vmatprep.subr.mxu0 0.0
        %955 = vmatpush2.xpose.msra.mxu0 0.0
        %956 = vmatprep.subr.mxu0 0.0
        %957 = vmatpush2.xpose.msra.mxu0 0.0
        %958 = vmatprep.subr.mxu0 0.0
        %959 = vmatpush2.xpose.msra.mxu0 0.0
        %960 = vmatprep.subr.mxu0 0.0
        %961 = vmatpush2.xpose.msra.mxu0 0.0
        %962 = vmatprep.subr.mxu0 0.0
        %963 = vmatpush2.xpose.msra.mxu0 0.0
        %964 = vmatprep.subr.mxu0 0.0
        %965 = vmatpush2.xpose.msra.mxu0 0.0
        %966 = vmatprep.subr.mxu0 0.0
        %967 = vmatpush2.xpose.msra.mxu0 0.0
        %968 = vmatprep.subr.mxu0 0.0
        %969 = vmatpush2.xpose.msra.mxu0 0.0
        %970 = vmatprep.subr.mxu0 0.0
        %971 = vmatpush2.xpose.msra.mxu0 0.0
        %972 = vmatprep.subr.mxu0 0.0
        %973 = vmatpush2.xpose.msra.mxu0 0.0
        %974 = vmatprep.subr.mxu0 0.0
        %975 = vmatpush2.xpose.msra.mxu0 0.0
        %976 = vmatprep.subr.mxu0 0.0
        %977 = vmatpush2.xpose.msra.mxu0 0.0
        %978 = vmatprep.subr.mxu0 0.0
        %979 = vmatpush2.xpose.msra.mxu0 0.0
        %980 = vmatprep.subr.mxu0 0.0
        %981 = vmatpush2.xpose.msra.mxu0 0.0
        %982 = vmatprep.mubr.f32.mxu0 0.0
        %983 = vmatmul.mubr.f32.gmra.mxu0 %v913
        %v984 = vpop.f32.mrf.mxu0
        %v985 = vadd.f32 0.0, %v984
        %v986 = vpop.f32.mrf.mxu0
        %987 = vdwg.mxu0
        %v989 = vsel %vm835, %v825, 0
        %v992 = vsel %vm835, %v829, 0
        %994 = vmatprep.subr.mxu0 0.0
        %995 = vmatpush1.xpose.msra.mxu0 0.0
        %996 = vmatprep.subr.mxu0 0.0
        %997 = vmatpush1.xpose.msra.mxu0 0.0
        %998 = vmatprep.subr.mxu0 0.0
        %999 = vmatpush1.xpose.msra.mxu0 0.0
        %1000 = vmatprep.subr.mxu0 0.0
        %1001 = vmatpush1.xpose.msra.mxu0 0.0
        %1002 = vmatprep.subr.mxu0 0.0
        %1003 = vmatpush1.xpose.msra.mxu0 0.0
        %1004 = vmatprep.subr.mxu0 0.0
        %1005 = vmatpush1.xpose.msra.mxu0 0.0
        %1006 = vmatprep.subr.mxu0 0.0
        %1007 = vmatpush1.xpose.msra.mxu0 0.0
        %1008 = vmatprep.subr.mxu0 0.0
        %1009 = vmatpush1.xpose.msra.mxu0 0.0
        %1010 = vmatprep.subr.mxu0 0.0
        %1011 = vmatpush1.xpose.msra.mxu0 0.0
        %1012 = vmatprep.subr.mxu0 0.0
        %1013 = vmatpush1.xpose.msra.mxu0 0.0
        %1014 = vmatprep.subr.mxu0 0.0
        %1015 = vmatpush1.xpose.msra.mxu0 0.0
        %1016 = vmatprep.subr.mxu0 0.0
        %1017 = vmatpush1.xpose.msra.mxu0 0.0
        %1018 = vmatprep.subr.mxu0 0.0
        %1019 = vmatpush1.xpose.msra.mxu0 0.0
        %1020 = vmatprep.subr.mxu0 0.0
        %1021 = vmatpush1.xpose.msra.mxu0 0.0
        %1022 = vmatprep.subr.mxu0 0.0
        %1023 = vmatpush1.xpose.msra.mxu0 0.0
        %1024 = vmatprep.subr.mxu0 0.0
        %1025 = vmatpush1.xpose.msra.mxu0 %v992
        %1026 = vmatprep.subr.mxu0 0.0
        %1027 = vmatpush2.xpose.msra.mxu0 0.0
        %1028 = vmatprep.subr.mxu0 0.0
        %1029 = vmatpush2.xpose.msra.mxu0 0.0
        %1030 = vmatprep.subr.mxu0 0.0
        %1031 = vmatpush2.xpose.msra.mxu0 0.0
        %1032 = vmatprep.subr.mxu0 0.0
        %1033 = vmatpush2.xpose.msra.mxu0 0.0
        %1034 = vmatprep.subr.mxu0 0.0
        %1035 = vmatpush2.xpose.msra.mxu0 0.0
        %1036 = vmatprep.subr.mxu0 0.0
        %1037 = vmatpush2.xpose.msra.mxu0 0.0
        %1038 = vmatprep.subr.mxu0 0.0
        %1039 = vmatpush2.xpose.msra.mxu0 0.0
        %1040 = vmatprep.subr.mxu0 0.0
        %1041 = vmatpush2.xpose.msra.mxu0 0.0
        %1042 = vmatprep.subr.mxu0 0.0
        %1043 = vmatpush2.xpose.msra.mxu0 0.0
        %1044 = vmatprep.subr.mxu0 0.0
        %1045 = vmatpush2.xpose.msra.mxu0 0.0
        %1046 = vmatprep.subr.mxu0 0.0
        %1047 = vmatpush2.xpose.msra.mxu0 0.0
        %1048 = vmatprep.subr.mxu0 0.0
        %1049 = vmatpush2.xpose.msra.mxu0 0.0
        %1050 = vmatprep.subr.mxu0 0.0
        %1051 = vmatpush2.xpose.msra.mxu0 0.0
        %1052 = vmatprep.subr.mxu0 0.0
        %1053 = vmatpush2.xpose.msra.mxu0 0.0
        %1054 = vmatprep.subr.mxu0 0.0
        %1055 = vmatpush2.xpose.msra.mxu0 0.0
        %1056 = vmatprep.subr.mxu0 0.0
        %1057 = vmatpush2.xpose.msra.mxu0 0.0
        %1058 = vmatprep.mubr.f32.mxu0 0.0
        %1059 = vmatmul.mubr.f32.gmra.mxu0 %v989
        %v1060 = vpop.f32.mrf.mxu0
        %v1061 = vadd.f32 0.0, %v1060
        %v1062 = vpop.f32.mrf.mxu0
        %1063 = vdwg.mxu0
        %v1065 = vsel %vm835, %v826, 0
        %v1068 = vsel %vm835, %v830, 0
        %1070 = vmatprep.subr.mxu0 0.0
        %1071 = vmatpush1.xpose.msra.mxu0 0.0
        %1072 = vmatprep.subr.mxu0 0.0
        %1073 = vmatpush1.xpose.msra.mxu0 0.0
        %1074 = vmatprep.subr.mxu0 0.0
        %1075 = vmatpush1.xpose.msra.mxu0 0.0
        %1076 = vmatprep.subr.mxu0 0.0
        %1077 = vmatpush1.xpose.msra.mxu0 0.0
        %1078 = vmatprep.subr.mxu0 0.0
        %1079 = vmatpush1.xpose.msra.mxu0 0.0
        %1080 = vmatprep.subr.mxu0 0.0
        %1081 = vmatpush1.xpose.msra.mxu0 0.0
        %1082 = vmatprep.subr.mxu0 0.0
        %1083 = vmatpush1.xpose.msra.mxu0 0.0
        %1084 = vmatprep.subr.mxu0 0.0
        %1085 = vmatpush1.xpose.msra.mxu0 0.0
        %1086 = vmatprep.subr.mxu0 0.0
        %1087 = vmatpush1.xpose.msra.mxu0 0.0
        %1088 = vmatprep.subr.mxu0 0.0
        %1089 = vmatpush1.xpose.msra.mxu0 0.0
        %1090 = vmatprep.subr.mxu0 0.0
        %1091 = vmatpush1.xpose.msra.mxu0 0.0
        %1092 = vmatprep.subr.mxu0 0.0
        %1093 = vmatpush1.xpose.msra.mxu0 0.0
        %1094 = vmatprep.subr.mxu0 0.0
        %1095 = vmatpush1.xpose.msra.mxu0 0.0
        %1096 = vmatprep.subr.mxu0 0.0
        %1097 = vmatpush1.xpose.msra.mxu0 0.0
        %1098 = vmatprep.subr.mxu0 0.0
        %1099 = vmatpush1.xpose.msra.mxu0 0.0
        %1100 = vmatprep.subr.mxu0 0.0
        %1101 = vmatpush1.xpose.msra.mxu0 %v1068
        %1102 = vmatprep.subr.mxu0 0.0
        %1103 = vmatpush2.xpose.msra.mxu0 0.0
        %1104 = vmatprep.subr.mxu0 0.0
        %1105 = vmatpush2.xpose.msra.mxu0 0.0
        %1106 = vmatprep.subr.mxu0 0.0
        %1107 = vmatpush2.xpose.msra.mxu0 0.0
        %1108 = vmatprep.subr.mxu0 0.0
        %1109 = vmatpush2.xpose.msra.mxu0 0.0
        %1110 = vmatprep.subr.mxu0 0.0
        %1111 = vmatpush2.xpose.msra.mxu0 0.0
        %1112 = vmatprep.subr.mxu0 0.0
        %1113 = vmatpush2.xpose.msra.mxu0 0.0
        %1114 = vmatprep.subr.mxu0 0.0
        %1115 = vmatpush2.xpose.msra.mxu0 0.0
        %1116 = vmatprep.subr.mxu0 0.0
        %1117 = vmatpush2.xpose.msra.mxu0 0.0
        %1118 = vmatprep.subr.mxu0 0.0
        %1119 = vmatpush2.xpose.msra.mxu0 0.0
        %1120 = vmatprep.subr.mxu0 0.0
        %1121 = vmatpush2.xpose.msra.mxu0 0.0
        %1122 = vmatprep.subr.mxu0 0.0
        %1123 = vmatpush2.xpose.msra.mxu0 0.0
        %1124 = vmatprep.subr.mxu0 0.0
        %1125 = vmatpush2.xpose.msra.mxu0 0.0
        %1126 = vmatprep.subr.mxu0 0.0
        %1127 = vmatpush2.xpose.msra.mxu0 0.0
        %1128 = vmatprep.subr.mxu0 0.0
        %1129 = vmatpush2.xpose.msra.mxu0 0.0
        %1130 = vmatprep.subr.mxu0 0.0
        %1131 = vmatpush2.xpose.msra.mxu0 0.0
        %1132 = vmatprep.subr.mxu0 0.0
        %1133 = vmatpush2.xpose.msra.mxu0 0.0
        %1134 = vmatprep.mubr.f32.mxu0 0.0
        %1135 = vmatmul.mubr.f32.gmra.mxu0 %v1065
        %v1136 = vpop.f32.mrf.mxu0
        %v1137 = vadd.f32 0.0, %v1136
        %v1138 = vpop.f32.mrf.mxu0
        %1139 = vdwg.mxu0
        %v1140 = vsel %vm835, %v909, -inf
        %1141 = vmax.xlane.f32.xlu0 %v1140
        %v1142 = vpop.xlane.xlu0 %1141
        %v1143 = vsel %vm835, %v985, -inf
        %1144 = vmax.xlane.f32.xlu0 %v1143
        %v1145 = vpop.xlane.xlu0 %1144
        %v1146 = vsel %vm835, %v1061, -inf
        %1147 = vmax.xlane.f32.xlu0 %v1146
        %v1148 = vpop.xlane.xlu0 %1147
        %v1149 = vsel %vm835, %v1137, -inf
        %1150 = vmax.xlane.f32.xlu0 %v1149
        %v1151 = vpop.xlane.xlu0 %1150
        %v1152 = vsub.f32 %v909, %v1142
        %v1153 = vsub.f32 %v985, %v1145
        %v1154 = vsub.f32 %v1061, %v1148
        %v1155 = vsub.f32 %v1137, %v1151
        %v1156 = vmul.f32 %v1152, 1.442695
        %v1157 = vpow.pop %v1156
        %v1158 = vmul.f32 %v1153, 1.442695
        %v1159 = vpow.pop %v1158
        %v1160 = vmul.f32 %v1154, 1.442695
        %v1161 = vpow.pop %v1160
        %v1162 = vmul.f32 %v1155, 1.442695
        %v1163 = vpow.pop %v1162
        %v1164 = vsel %vm835, %v1157, 0.0
        %1165 = vadd.xlane.f32.xlu0 %v1164
        %v1166 = vpop.xlane.xlu0 %1165
        %v1167 = vsel %vm835, %v1159, 0.0
        %1168 = vadd.xlane.f32.xlu0 %v1167
        %v1169 = vpop.xlane.xlu0 %1168
        %v1170 = vsel %vm835, %v1161, 0.0
        %1171 = vadd.xlane.f32.xlu0 %v1170
        %v1172 = vpop.xlane.xlu0 %1171
        %v1173 = vsel %vm835, %v1163, 0.0
        %1174 = vadd.xlane.f32.xlu0 %v1173
        %v1175 = vpop.xlane.xlu0 %1174
        %v1176 = vrcp.pop %v1166
        %v1177 = vrcp.pop %v1169
        %v1178 = vrcp.pop %v1172
        %v1179 = vrcp.pop %v1175
        %v1180 = vmul.f32 %v1157, %v1176
        %v1181 = vmul.f32 %v1159, %v1177
        %v1182 = vmul.f32 %v1161, %v1178
        %v1183 = vmul.f32 %v1163, %v1179
        %1184 = vst.msk [vmem:[%s596] sm:$0xff] %vm835, %v1180
        %1185 = vst.msk [vmem:[%s596 + $0x8] sm:$0xff] %vm835, %v1181
        %1186 = vst.msk [vmem:[%s596 + $0x10] sm:$0xff] %vm835, %v1182
        %1187 = vst.msk [vmem:[%s596 + $0x18] sm:$0xff] %vm835, %v1183
        %v1189 = vsel %vm835, %v1180, 0
        %1191 = vmatprep.subr.mxu0 0.0
        %1192 = vmatpush1.msra.mxu0 0.0
        %1193 = vmatprep.subr.mxu0 0.0
        %1194 = vmatpush1.msra.mxu0 0.0
        %1195 = vmatprep.subr.mxu0 0.0
        %1196 = vmatpush1.msra.mxu0 0.0
        %1197 = vmatprep.subr.mxu0 0.0
        %1198 = vmatpush1.msra.mxu0 0.0
        %1199 = vmatprep.subr.mxu0 0.0
        %1200 = vmatpush1.msra.mxu0 0.0
        %1201 = vmatprep.subr.mxu0 0.0
        %1202 = vmatpush1.msra.mxu0 0.0
        %1203 = vmatprep.subr.mxu0 0.0
        %1204 = vmatpush1.msra.mxu0 0.0
        %1205 = vmatprep.subr.mxu0 0.0
        %1206 = vmatpush1.msra.mxu0 0.0
        %1207 = vmatprep.subr.mxu0 0.0
        %1208 = vmatpush1.msra.mxu0 0.0
        %1209 = vmatprep.subr.mxu0 0.0
        %1210 = vmatpush1.msra.mxu0 0.0
        %1211 = vmatprep.subr.mxu0 0.0
        %1212 = vmatpush1.msra.mxu0 0.0
        %1213 = vmatprep.subr.mxu0 0.0
        %1214 = vmatpush1.msra.mxu0 0.0
        %1215 = vmatprep.subr.mxu0 0.0
        %1216 = vmatpush1.msra.mxu0 0.0
        %1217 = vmatprep.subr.mxu0 0.0
        %1218 = vmatpush1.msra.mxu0 0.0
        %1219 = vmatprep.subr.mxu0 0.0
        %1220 = vmatpush1.msra.mxu0 0.0
        %1221 = vmatprep.subr.mxu0 0.0
        %1222 = vmatpush1.msra.mxu0 %v831
        %1223 = vmatprep.subr.mxu0 0.0
        %1224 = vmatpush2.msra.mxu0 0.0
        %1225 = vmatprep.subr.mxu0 0.0
        %1226 = vmatpush2.msra.mxu0 0.0
        %1227 = vmatprep.subr.mxu0 0.0
        %1228 = vmatpush2.msra.mxu0 0.0
        %1229 = vmatprep.subr.mxu0 0.0
        %1230 = vmatpush2.msra.mxu0 0.0
        %1231 = vmatprep.subr.mxu0 0.0
        %1232 = vmatpush2.msra.mxu0 0.0
        %1233 = vmatprep.subr.mxu0 0.0
        %1234 = vmatpush2.msra.mxu0 0.0
        %1235 = vmatprep.subr.mxu0 0.0
        %1236 = vmatpush2.msra.mxu0 0.0
        %1237 = vmatprep.subr.mxu0 0.0
        %1238 = vmatpush2.msra.mxu0 0.0
        %1239 = vmatprep.subr.mxu0 0.0
        %1240 = vmatpush2.msra.mxu0 0.0
        %1241 = vmatprep.subr.mxu0 0.0
        %1242 = vmatpush2.msra.mxu0 0.0
        %1243 = vmatprep.subr.mxu0 0.0
        %1244 = vmatpush2.msra.mxu0 0.0
        %1245 = vmatprep.subr.mxu0 0.0
        %1246 = vmatpush2.msra.mxu0 0.0
        %1247 = vmatprep.subr.mxu0 0.0
        %1248 = vmatpush2.msra.mxu0 0.0
        %1249 = vmatprep.subr.mxu0 0.0
        %1250 = vmatpush2.msra.mxu0 0.0
        %1251 = vmatprep.subr.mxu0 0.0
        %1252 = vmatpush2.msra.mxu0 0.0
        %1253 = vmatprep.subr.mxu0 0.0
        %1254 = vmatpush2.msra.mxu0 0.0
        %1255 = vmatprep.mubr.f32.mxu0 0.0
        %1256 = vmatmul.mubr.f32.gmra.mxu0 %v1189
        %v1257 = vpop.f32.mrf.mxu0
        %v1258 = vadd.f32 0.0, %v1257
        %v1259 = vpop.f32.mrf.mxu0
        %1260 = vdwg.mxu0
        %v1262 = vsel %vm835, %v1181, 0
        %1264 = vmatprep.subr.mxu0 0.0
        %1265 = vmatpush1.msra.mxu0 0.0
        %1266 = vmatprep.subr.mxu0 0.0
        %1267 = vmatpush1.msra.mxu0 0.0
        %1268 = vmatprep.subr.mxu0 0.0
        %1269 = vmatpush1.msra.mxu0 0.0
        %1270 = vmatprep.subr.mxu0 0.0
        %1271 = vmatpush1.msra.mxu0 0.0
        %1272 = vmatprep.subr.mxu0 0.0
        %1273 = vmatpush1.msra.mxu0 0.0
        %1274 = vmatprep.subr.mxu0 0.0
        %1275 = vmatpush1.msra.mxu0 0.0
        %1276 = vmatprep.subr.mxu0 0.0
        %1277 = vmatpush1.msra.mxu0 0.0
        %1278 = vmatprep.subr.mxu0 0.0
        %1279 = vmatpush1.msra.mxu0 0.0
        %1280 = vmatprep.subr.mxu0 0.0
        %1281 = vmatpush1.msra.mxu0 0.0
        %1282 = vmatprep.subr.mxu0 0.0
        %1283 = vmatpush1.msra.mxu0 0.0
        %1284 = vmatprep.subr.mxu0 0.0
        %1285 = vmatpush1.msra.mxu0 0.0
        %1286 = vmatprep.subr.mxu0 0.0
        %1287 = vmatpush1.msra.mxu0 0.0
        %1288 = vmatprep.subr.mxu0 0.0
        %1289 = vmatpush1.msra.mxu0 0.0
        %1290 = vmatprep.subr.mxu0 0.0
        %1291 = vmatpush1.msra.mxu0 0.0
        %1292 = vmatprep.subr.mxu0 0.0
        %1293 = vmatpush1.msra.mxu0 0.0
        %1294 = vmatprep.subr.mxu0 0.0
        %1295 = vmatpush1.msra.mxu0 %v832
        %1296 = vmatprep.subr.mxu0 0.0
        %1297 = vmatpush2.msra.mxu0 0.0
        %1298 = vmatprep.subr.mxu0 0.0
        %1299 = vmatpush2.msra.mxu0 0.0
        %1300 = vmatprep.subr.mxu0 0.0
        %1301 = vmatpush2.msra.mxu0 0.0
        %1302 = vmatprep.subr.mxu0 0.0
        %1303 = vmatpush2.msra.mxu0 0.0
        %1304 = vmatprep.subr.mxu0 0.0
        %1305 = vmatpush2.msra.mxu0 0.0
        %1306 = vmatprep.subr.mxu0 0.0
        %1307 = vmatpush2.msra.mxu0 0.0
        %1308 = vmatprep.subr.mxu0 0.0
        %1309 = vmatpush2.msra.mxu0 0.0
        %1310 = vmatprep.subr.mxu0 0.0
        %1311 = vmatpush2.msra.mxu0 0.0
        %1312 = vmatprep.subr.mxu0 0.0
        %1313 = vmatpush2.msra.mxu0 0.0
        %1314 = vmatprep.subr.mxu0 0.0
        %1315 = vmatpush2.msra.mxu0 0.0
        %1316 = vmatprep.subr.mxu0 0.0
        %1317 = vmatpush2.msra.mxu0 0.0
        %1318 = vmatprep.subr.mxu0 0.0
        %1319 = vmatpush2.msra.mxu0 0.0
        %1320 = vmatprep.subr.mxu0 0.0
        %1321 = vmatpush2.msra.mxu0 0.0
        %1322 = vmatprep.subr.mxu0 0.0
        %1323 = vmatpush2.msra.mxu0 0.0
        %1324 = vmatprep.subr.mxu0 0.0
        %1325 = vmatpush2.msra.mxu0 0.0
        %1326 = vmatprep.subr.mxu0 0.0
        %1327 = vmatpush2.msra.mxu0 0.0
        %1328 = vmatprep.mubr.f32.mxu0 0.0
        %1329 = vmatmul.mubr.f32.gmra.mxu0 %v1262
        %v1330 = vpop.f32.mrf.mxu0
        %v1331 = vadd.f32 0.0, %v1330
        %v1332 = vpop.f32.mrf.mxu0
        %1333 = vdwg.mxu0
        %v1335 = vsel %vm835, %v1182, 0
        %1337 = vmatprep.subr.mxu0 0.0
        %1338 = vmatpush1.msra.mxu0 0.0
        %1339 = vmatprep.subr.mxu0 0.0
        %1340 = vmatpush1.msra.mxu0 0.0
        %1341 = vmatprep.subr.mxu0 0.0
        %1342 = vmatpush1.msra.mxu0 0.0
        %1343 = vmatprep.subr.mxu0 0.0
        %1344 = vmatpush1.msra.mxu0 0.0
        %1345 = vmatprep.subr.mxu0 0.0
        %1346 = vmatpush1.msra.mxu0 0.0
        %1347 = vmatprep.subr.mxu0 0.0
        %1348 = vmatpush1.msra.mxu0 0.0
        %1349 = vmatprep.subr.mxu0 0.0
        %1350 = vmatpush1.msra.mxu0 0.0
        %1351 = vmatprep.subr.mxu0 0.0
        %1352 = vmatpush1.msra.mxu0 0.0
        %1353 = vmatprep.subr.mxu0 0.0
        %1354 = vmatpush1.msra.mxu0 0.0
        %1355 = vmatprep.subr.mxu0 0.0
        %1356 = vmatpush1.msra.mxu0 0.0
        %1357 = vmatprep.subr.mxu0 0.0
        %1358 = vmatpush1.msra.mxu0 0.0
        %1359 = vmatprep.subr.mxu0 0.0
        %1360 = vmatpush1.msra.mxu0 0.0
        %1361 = vmatprep.subr.mxu0 0.0
        %1362 = vmatpush1.msra.mxu0 0.0
        %1363 = vmatprep.subr.mxu0 0.0
        %1364 = vmatpush1.msra.mxu0 0.0
        %1365 = vmatprep.subr.mxu0 0.0
        %1366 = vmatpush1.msra.mxu0 0.0
        %1367 = vmatprep.subr.mxu0 0.0
        %1368 = vmatpush1.msra.mxu0 %v833
        %1369 = vmatprep.subr.mxu0 0.0
        %1370 = vmatpush2.msra.mxu0 0.0
        %1371 = vmatprep.subr.mxu0 0.0
        %1372 = vmatpush2.msra.mxu0 0.0
        %1373 = vmatprep.subr.mxu0 0.0
        %1374 = vmatpush2.msra.mxu0 0.0
        %1375 = vmatprep.subr.mxu0 0.0
        %1376 = vmatpush2.msra.mxu0 0.0
        %1377 = vmatprep.subr.mxu0 0.0
        %1378 = vmatpush2.msra.mxu0 0.0
        %1379 = vmatprep.subr.mxu0 0.0
        %1380 = vmatpush2.msra.mxu0 0.0
        %1381 = vmatprep.subr.mxu0 0.0
        %1382 = vmatpush2.msra.mxu0 0.0
        %1383 = vmatprep.subr.mxu0 0.0
        %1384 = vmatpush2.msra.mxu0 0.0
        %1385 = vmatprep.subr.mxu0 0.0
        %1386 = vmatpush2.msra.mxu0 0.0
        %1387 = vmatprep.subr.mxu0 0.0
        %1388 = vmatpush2.msra.mxu0 0.0
        %1389 = vmatprep.subr.mxu0 0.0
        %1390 = vmatpush2.msra.mxu0 0.0
        %1391 = vmatprep.subr.mxu0 0.0
        %1392 = vmatpush2.msra.mxu0 0.0
        %1393 = vmatprep.subr.mxu0 0.0
        %1394 = vmatpush2.msra.mxu0 0.0
        %1395 = vmatprep.subr.mxu0 0.0
        %1396 = vmatpush2.msra.mxu0 0.0
        %1397 = vmatprep.subr.mxu0 0.0
        %1398 = vmatpush2.msra.mxu0 0.0
        %1399 = vmatprep.subr.mxu0 0.0
        %1400 = vmatpush2.msra.mxu0 0.0
        %1401 = vmatprep.mubr.f32.mxu0 0.0
        %1402 = vmatmul.mubr.f32.gmra.mxu0 %v1335
        %v1403 = vpop.f32.mrf.mxu0
        %v1404 = vadd.f32 0.0, %v1403
        %v1405 = vpop.f32.mrf.mxu0
        %1406 = vdwg.mxu0
        %v1408 = vsel %vm835, %v1183, 0
        %1410 = vmatprep.subr.mxu0 0.0
        %1411 = vmatpush1.msra.mxu0 0.0
        %1412 = vmatprep.subr.mxu0 0.0
        %1413 = vmatpush1.msra.mxu0 0.0
        %1414 = vmatprep.subr.mxu0 0.0
        %1415 = vmatpush1.msra.mxu0 0.0
        %1416 = vmatprep.subr.mxu0 0.0
        %1417 = vmatpush1.msra.mxu0 0.0
        %1418 = vmatprep.subr.mxu0 0.0
        %1419 = vmatpush1.msra.mxu0 0.0
        %1420 = vmatprep.subr.mxu0 0.0
        %1421 = vmatpush1.msra.mxu0 0.0
        %1422 = vmatprep.subr.mxu0 0.0
        %1423 = vmatpush1.msra.mxu0 0.0
        %1424 = vmatprep.subr.mxu0 0.0
        %1425 = vmatpush1.msra.mxu0 0.0
        %1426 = vmatprep.subr.mxu0 0.0
        %1427 = vmatpush1.msra.mxu0 0.0
        %1428 = vmatprep.subr.mxu0 0.0
        %1429 = vmatpush1.msra.mxu0 0.0
        %1430 = vmatprep.subr.mxu0 0.0
        %1431 = vmatpush1.msra.mxu0 0.0
        %1432 = vmatprep.subr.mxu0 0.0
        %1433 = vmatpush1.msra.mxu0 0.0
        %1434 = vmatprep.subr.mxu0 0.0
        %1435 = vmatpush1.msra.mxu0 0.0
        %1436 = vmatprep.subr.mxu0 0.0
        %1437 = vmatpush1.msra.mxu0 0.0
        %1438 = vmatprep.subr.mxu0 0.0
        %1439 = vmatpush1.msra.mxu0 0.0
        %1440 = vmatprep.subr.mxu0 0.0
        %1441 = vmatpush1.msra.mxu0 %v834
        %1442 = vmatprep.subr.mxu0 0.0
        %1443 = vmatpush2.msra.mxu0 0.0
        %1444 = vmatprep.subr.mxu0 0.0
        %1445 = vmatpush2.msra.mxu0 0.0
        %1446 = vmatprep.subr.mxu0 0.0
        %1447 = vmatpush2.msra.mxu0 0.0
        %1448 = vmatprep.subr.mxu0 0.0
        %1449 = vmatpush2.msra.mxu0 0.0
        %1450 = vmatprep.subr.mxu0 0.0
        %1451 = vmatpush2.msra.mxu0 0.0
        %1452 = vmatprep.subr.mxu0 0.0
        %1453 = vmatpush2.msra.mxu0 0.0
        %1454 = vmatprep.subr.mxu0 0.0
        %1455 = vmatpush2.msra.mxu0 0.0
        %1456 = vmatprep.subr.mxu0 0.0
        %1457 = vmatpush2.msra.mxu0 0.0
        %1458 = vmatprep.subr.mxu0 0.0
        %1459 = vmatpush2.msra.mxu0 0.0
        %1460 = vmatprep.subr.mxu0 0.0
        %1461 = vmatpush2.msra.mxu0 0.0
        %1462 = vmatprep.subr.mxu0 0.0
        %1463 = vmatpush2.msra.mxu0 0.0
        %1464 = vmatprep.subr.mxu0 0.0
        %1465 = vmatpush2.msra.mxu0 0.0
        %1466 = vmatprep.subr.mxu0 0.0
        %1467 = vmatpush2.msra.mxu0 0.0
        %1468 = vmatprep.subr.mxu0 0.0
        %1469 = vmatpush2.msra.mxu0 0.0
        %1470 = vmatprep.subr.mxu0 0.0
        %1471 = vmatpush2.msra.mxu0 0.0
        %1472 = vmatprep.subr.mxu0 0.0
        %1473 = vmatpush2.msra.mxu0 0.0
        %1474 = vmatprep.mubr.f32.mxu0 0.0
        %1475 = vmatmul.mubr.f32.gmra.mxu0 %v1408
        %v1476 = vpop.f32.mrf.mxu0
        %v1477 = vadd.f32 0.0, %v1476
        %v1478 = vpop.f32.mrf.mxu0
        %1479 = vdwg.mxu0
        %v1480 = vcombine.low %v1258, %v1404
        %v1481 = vcombine.high %v1258, %v1404
        %v1483 = vunpack.c.l.s4 1983009808
        %v1484 = vunpack.c.0.s8 %v1483
        %v1485 = vlaneseq
        %v1486 = vshrl.u32 %v1485, 7
        %v1487 = vsub.s32 %v1484, %v1486
        %v1488 = vrot.slane %v1480, %v1487
        %v1490 = vunpack.c.l.s4 1983009808
        %v1491 = vunpack.c.0.s8 %v1490
        %v1492 = vlaneseq
        %v1493 = vshrl.u32 %v1492, 7
        %v1494 = vsub.s32 %v1491, %v1493
        %v1495 = vrot.slane %v1481, %v1494
        %v1496 = vcombine.low %v1331, %v1477
        %v1497 = vcombine.high %v1331, %v1477
        %v1499 = vunpack.c.l.s4 1983009808
        %v1500 = vunpack.c.0.s8 %v1499
        %v1501 = vlaneseq
        %v1502 = vshrl.u32 %v1501, 7
        %v1503 = vsub.s32 %v1500, %v1502
        %v1504 = vrot.slane %v1496, %v1503
        %v1506 = vunpack.c.l.s4 1983009808
        %v1507 = vunpack.c.0.s8 %v1506
        %v1508 = vlaneseq
        %v1509 = vshrl.u32 %v1508, 7
        %v1510 = vsub.s32 %v1507, %v1509
        %v1511 = vrot.slane %v1497, %v1510
        %v1512 = vcombine.low %v1488, %v1504
        %v1513 = vcombine.high %v1488, %v1504
        %v1515 = vunpack.c.l.s4 1934713408
        %v1516 = vunpack.c.0.s8 %v1515
        %v1517 = vlaneseq
        %v1518 = vshrl.u32 %v1517, 7
        %v1519 = vsub.s32 %v1516, %v1518
        %v1520 = vrot.slane %v1512, %v1519
        %v1522 = vunpack.c.l.s4 1934713408
        %v1523 = vunpack.c.0.s8 %v1522
        %v1524 = vlaneseq
        %v1525 = vshrl.u32 %v1524, 7
        %v1526 = vsub.s32 %v1523, %v1525
        %v1527 = vrot.slane %v1513, %v1526
        %v1528 = vcombine.low %v1495, %v1511
        %v1529 = vcombine.high %v1495, %v1511
        %v1531 = vunpack.c.l.s4 1934713408
        %v1532 = vunpack.c.0.s8 %v1531
        %v1533 = vlaneseq
        %v1534 = vshrl.u32 %v1533, 7
        %v1535 = vsub.s32 %v1532, %v1534
        %v1536 = vrot.slane %v1528, %v1535
        %v1538 = vunpack.c.l.s4 1934713408
        %v1539 = vunpack.c.0.s8 %v1538
        %v1540 = vlaneseq
        %v1541 = vshrl.u32 %v1540, 7
        %v1542 = vsub.s32 %v1539, %v1541
        %v1543 = vrot.slane %v1529, %v1542
        %v1544 = vcombine.high %v1520, 0.0
        %v1545 = vcombine.high %v1527, 0.0
        %v1546 = vcombine.high %v1536, 0.0
        %v1547 = vcombine.high %v1543, 0.0
        %v1548 = vcombine.low %v1520, %v1527
        %v1550 = vunpack.c.l.s4 1983009808
        %v1551 = vunpack.c.0.s8 %v1550
        %v1552 = vlaneseq
        %v1553 = vshrl.u32 %v1552, 7
        %v1554 = vsub.s32 %v1551, %v1553
        %v1555 = vrot.slane %v1548, %v1554
        %v1556 = vcombine.low %v1544, %v1545
        %v1558 = vunpack.c.l.s4 1983009808
        %v1559 = vunpack.c.0.s8 %v1558
        %v1560 = vlaneseq
        %v1561 = vshrl.u32 %v1560, 7
        %v1562 = vsub.s32 %v1559, %v1561
        %v1563 = vrot.slane %v1556, %v1562
        %v1564 = vcombine.low %v1536, %v1543
        %v1566 = vunpack.c.l.s4 1983009808
        %v1567 = vunpack.c.0.s8 %v1566
        %v1568 = vlaneseq
        %v1569 = vshrl.u32 %v1568, 7
        %v1570 = vsub.s32 %v1567, %v1569
        %v1571 = vrot.slane %v1564, %v1570
        %v1572 = vcombine.low %v1546, %v1547
        %v1574 = vunpack.c.l.s4 1983009808
        %v1575 = vunpack.c.0.s8 %v1574
        %v1576 = vlaneseq
        %v1577 = vshrl.u32 %v1576, 7
        %v1578 = vsub.s32 %v1575, %v1577
        %v1579 = vrot.slane %v1572, %v1578
        %v1580 = vcombine.low %v1555, %v1563
        %v1581 = vcombine.high %v1555, %v1563
        %v1583 = vunpack.c.l.s4 1934713408
        %v1584 = vunpack.c.0.s8 %v1583
        %v1585 = vlaneseq
        %v1586 = vshrl.u32 %v1585, 7
        %v1587 = vsub.s32 %v1584, %v1586
        %v1588 = vrot.slane %v1580, %v1587
        %v1590 = vunpack.c.l.s4 1934713408
        %v1591 = vunpack.c.0.s8 %v1590
        %v1592 = vlaneseq
        %v1593 = vshrl.u32 %v1592, 7
        %v1594 = vsub.s32 %v1591, %v1593
        %v1595 = vrot.slane %v1581, %v1594
        %v1596 = vcombine.low %v1571, %v1579
        %v1597 = vcombine.high %v1571, %v1579
        %v1599 = vunpack.c.l.s4 1934713408
        %v1600 = vunpack.c.0.s8 %v1599
        %v1601 = vlaneseq
        %v1602 = vshrl.u32 %v1601, 7
        %v1603 = vsub.s32 %v1600, %v1602
        %v1604 = vrot.slane %v1596, %v1603
        %v1606 = vunpack.c.l.s4 1934713408
        %v1607 = vunpack.c.0.s8 %v1606
        %v1608 = vlaneseq
        %v1609 = vshrl.u32 %v1608, 7
        %v1610 = vsub.s32 %v1607, %v1609
        %v1611 = vrot.slane %v1597, %v1610
        %v1612 = vcombine.low %v1588, %v1604
        %v1613 = vcombine.high %v1588, %v1604
        %v1614 = vcombine.low %v1595, %v1611
        %v1615 = vcombine.high %v1595, %v1611
        %1617 = vrot.lane.b32.xlu0 %v1613, 8
        %v1618 = vpop.permute.xlu0 %1617
        %1621 = vrot.lane.b32.xlu0 %v1614, 16
        %v1622 = vpop.permute.xlu0 %1621
        %1625 = vrot.lane.b32.xlu0 %v1615, 24
        %v1626 = vpop.permute.xlu0 %1625
        %v1628 = vsel %vm835, %v1612, %v1618
        %vm1629 = vcmask 130048
        %v1630 = vsel %vm1629, %v1628, %v1622
        %vm1631 = vcmask 195584
        %v1632 = vsel %vm1631, %v1630, %v1626
        %v1633 = vld [vmem:[#allocation7] sm:$0xff]
        %v1634 = vld [vmem:[#allocation7 + $0x8] sm:$0xff]
        %v1635 = vld [vmem:[#allocation7 + $0x10] sm:$0xff]
        %v1636 = vld [vmem:[#allocation7 + $0x18] sm:$0xff]
        %v1638 = vsel %vm607, %v1632, 0
        %1640 = vmatprep.subr.mxu0 0.0
        %1641 = vmatpush1.msra.mxu0 0.0
        %1642 = vmatprep.subr.mxu0 0.0
        %1643 = vmatpush1.msra.mxu0 0.0
        %1644 = vmatprep.subr.mxu0 0.0
        %1645 = vmatpush1.msra.mxu0 0.0
        %1646 = vmatprep.subr.mxu0 0.0
        %1647 = vmatpush1.msra.mxu0 0.0
        %1648 = vmatprep.subr.mxu0 0.0
        %1649 = vmatpush1.msra.mxu0 0.0
        %1650 = vmatprep.subr.mxu0 0.0
        %1651 = vmatpush1.msra.mxu0 0.0
        %1652 = vmatprep.subr.mxu0 0.0
        %1653 = vmatpush1.msra.mxu0 0.0
        %1654 = vmatprep.subr.mxu0 0.0
        %1655 = vmatpush1.msra.mxu0 0.0
        %1656 = vmatprep.subr.mxu0 0.0
        %1657 = vmatpush1.msra.mxu0 0.0
        %1658 = vmatprep.subr.mxu0 0.0
        %1659 = vmatpush1.msra.mxu0 0.0
        %1660 = vmatprep.subr.mxu0 0.0
        %1661 = vmatpush1.msra.mxu0 0.0
        %1662 = vmatprep.subr.mxu0 0.0
        %1663 = vmatpush1.msra.mxu0 0.0
        %1664 = vmatprep.subr.mxu0 0.0
        %1665 = vmatpush1.msra.mxu0 %v1636
        %1666 = vmatprep.subr.mxu0 0.0
        %1667 = vmatpush1.msra.mxu0 %v1635
        %1668 = vmatprep.subr.mxu0 0.0
        %1669 = vmatpush1.msra.mxu0 %v1634
        %1670 = vmatprep.subr.mxu0 0.0
        %1671 = vmatpush1.msra.mxu0 %v1633
        %1672 = vmatprep.subr.mxu0 0.0
        %1673 = vmatpush2.msra.mxu0 0.0
        %1674 = vmatprep.subr.mxu0 0.0
        %1675 = vmatpush2.msra.mxu0 0.0
        %1676 = vmatprep.subr.mxu0 0.0
        %1677 = vmatpush2.msra.mxu0 0.0
        %1678 = vmatprep.subr.mxu0 0.0
        %1679 = vmatpush2.msra.mxu0 0.0
        %1680 = vmatprep.subr.mxu0 0.0
        %1681 = vmatpush2.msra.mxu0 0.0
        %1682 = vmatprep.subr.mxu0 0.0
        %1683 = vmatpush2.msra.mxu0 0.0
        %1684 = vmatprep.subr.mxu0 0.0
        %1685 = vmatpush2.msra.mxu0 0.0
        %1686 = vmatprep.subr.mxu0 0.0
        %1687 = vmatpush2.msra.mxu0 0.0
        %1688 = vmatprep.subr.mxu0 0.0
        %1689 = vmatpush2.msra.mxu0 0.0
        %1690 = vmatprep.subr.mxu0 0.0
        %1691 = vmatpush2.msra.mxu0 0.0
        %1692 = vmatprep.subr.mxu0 0.0
        %1693 = vmatpush2.msra.mxu0 0.0
        %1694 = vmatprep.subr.mxu0 0.0
        %1695 = vmatpush2.msra.mxu0 0.0
        %1696 = vmatprep.subr.mxu0 0.0
        %1697 = vmatpush2.msra.mxu0 0.0
        %1698 = vmatprep.subr.mxu0 0.0
        %1699 = vmatpush2.msra.mxu0 0.0
        %1700 = vmatprep.subr.mxu0 0.0
        %1701 = vmatpush2.msra.mxu0 0.0
        %1702 = vmatprep.subr.mxu0 0.0
        %1703 = vmatpush2.msra.mxu0 0.0
        %1704 = vmatprep.mubr.f32.mxu0 0.0
        %1705 = vmatmul.mubr.f32.gmra.mxu0 %v1638
        %v1706 = vpop.f32.mrf.mxu0
        %v1707 = vadd.f32 %v602, %v1706
        %v1708 = vpop.f32.mrf.mxu0
        %1709 = vdwg.mxu0
        %v1710 = vld [vmem:[%s5] sm:$0x1]
        %v1711 = vld [vmem:[%s6] sm:$0x1]
        %v1712 = vsel %vm607, %v1707, 0.0
        %1713 = vadd.xlane.f32.xlu0 %v1712
        %v1714 = vpop.xlane.xlu0 %1713
        %v1715 = vrcp.pop 32.0
        %v1716 = vmul.f32 %v1714, %v1715
        %v1717 = vsub.f32 %v1707, %v1716
        %v1718 = vmul.f32 %v1717, %v1717
        %v1719 = vsel %vm607, %v1718, 0.0
        %1720 = vadd.xlane.f32.xlu0 %v1719
        %v1721 = vpop.xlane.xlu0 %1720
        %v1722 = vmul.f32 %v1721, %v1715
        %v1723 = vadd.f32 %v1722, 1e-06
        %v1724 = vrsqrt.pop %v1723
        %v1725 = vmul.f32 %v1717, %v1724
        %v1727 = vlaneseq
        %v1728 = vshrl.u32 %v1727, 7
        %v1729 = vsub.s32 0, %v1728
        %v1730 = vrot.slane %v1710, %v1729
        %v1732 = vmul.f32 %v1725, %v1730
        %v1734 = vlaneseq
        %v1735 = vshrl.u32 %v1734, 7
        %v1736 = vsub.s32 0, %v1735
        %v1737 = vrot.slane %v1711, %v1736
        %v1739 = vadd.f32 %v1732, %v1737
        %v1740 = vld [vmem:[#allocation8] sm:$0xff]
        %v1741 = vld [vmem:[#allocation8 + $0x8] sm:$0xff]
        %v1742 = vld [vmem:[#allocation8 + $0x10] sm:$0xff]
        %v1743 = vld [vmem:[#allocation8 + $0x18] sm:$0xff]
        %v1744 = vld [vmem:[%s8] sm:$0x1]
        %v1746 = vlaneseq
        %v1747 = vshrl.u32 %v1746, 7
        %v1748 = vsub.s32 0, %v1747
        %v1749 = vrot.slane %v1744, %v1748
        %v1752 = vsel %vm607, %v1739, 0
        %1754 = vmatprep.subr.mxu0 0.0
        %1755 = vmatpush1.msra.mxu0 0.0
        %1756 = vmatprep.subr.mxu0 0.0
        %1757 = vmatpush1.msra.mxu0 0.0
        %1758 = vmatprep.subr.mxu0 0.0
        %1759 = vmatpush1.msra.mxu0 0.0
        %1760 = vmatprep.subr.mxu0 0.0
        %1761 = vmatpush1.msra.mxu0 0.0
        %1762 = vmatprep.subr.mxu0 0.0
        %1763 = vmatpush1.msra.mxu0 0.0
        %1764 = vmatprep.subr.mxu0 0.0
        %1765 = vmatpush1.msra.mxu0 0.0
        %1766 = vmatprep.subr.mxu0 0.0
        %1767 = vmatpush1.msra.mxu0 0.0
        %1768 = vmatprep.subr.mxu0 0.0
        %1769 = vmatpush1.msra.mxu0 0.0
        %1770 = vmatprep.subr.mxu0 0.0
        %1771 = vmatpush1.msra.mxu0 0.0
        %1772 = vmatprep.subr.mxu0 0.0
        %1773 = vmatpush1.msra.mxu0 0.0
        %1774 = vmatprep.subr.mxu0 0.0
        %1775 = vmatpush1.msra.mxu0 0.0
        %1776 = vmatprep.subr.mxu0 0.0
        %1777 = vmatpush1.msra.mxu0 0.0
        %1778 = vmatprep.subr.mxu0 0.0
        %1779 = vmatpush1.msra.mxu0 %v1743
        %1780 = vmatprep.subr.mxu0 0.0
        %1781 = vmatpush1.msra.mxu0 %v1742
        %1782 = vmatprep.subr.mxu0 0.0
        %1783 = vmatpush1.msra.mxu0 %v1741
        %1784 = vmatprep.subr.mxu0 0.0
        %1785 = vmatpush1.msra.mxu0 %v1740
        %1786 = vmatprep.subr.mxu0 0.0
        %1787 = vmatpush2.msra.mxu0 0.0
        %1788 = vmatprep.subr.mxu0 0.0
        %1789 = vmatpush2.msra.mxu0 0.0
        %1790 = vmatprep.subr.mxu0 0.0
        %1791 = vmatpush2.msra.mxu0 0.0
        %1792 = vmatprep.subr.mxu0 0.0
        %1793 = vmatpush2.msra.mxu0 0.0
        %1794 = vmatprep.subr.mxu0 0.0
        %1795 = vmatpush2.msra.mxu0 0.0
        %1796 = vmatprep.subr.mxu0 0.0
        %1797 = vmatpush2.msra.mxu0 0.0
        %1798 = vmatprep.subr.mxu0 0.0
        %1799 = vmatpush2.msra.mxu0 0.0
        %1800 = vmatprep.subr.mxu0 0.0
        %1801 = vmatpush2.msra.mxu0 0.0
        %1802 = vmatprep.subr.mxu0 0.0
        %1803 = vmatpush2.msra.mxu0 0.0
        %1804 = vmatprep.subr.mxu0 0.0
        %1805 = vmatpush2.msra.mxu0 0.0
        %1806 = vmatprep.subr.mxu0 0.0
        %1807 = vmatpush2.msra.mxu0 0.0
        %1808 = vmatprep.subr.mxu0 0.0
        %1809 = vmatpush2.msra.mxu0 0.0
        %1810 = vmatprep.subr.mxu0 0.0
        %1811 = vmatpush2.msra.mxu0 0.0
        %1812 = vmatprep.subr.mxu0 0.0
        %1813 = vmatpush2.msra.mxu0 0.0
        %1814 = vmatprep.subr.mxu0 0.0
        %1815 = vmatpush2.msra.mxu0 0.0
        %1816 = vmatprep.subr.mxu0 0.0
        %1817 = vmatpush2.msra.mxu0 0.0
        %1818 = vmatprep.mubr.f32.mxu0 0.0
        %1819 = vmatmul.mubr.f32.gmra.mxu0 %v1752
        %v1820 = vpop.f32.mrf.mxu0
        %v1821 = vadd.f32 %v1749, %v1820
        %v1822 = vpop.f32.mrf.mxu0
        %1823 = vdwg.mxu0
        %v1824 = vmax.f32 %v1821, 0.0
        %v1825 = vld [vmem:[%s9] sm:$0xff]
        %v1826 = vld [vmem:[%s9 + $0x8] sm:$0xff]
        %v1827 = vld [vmem:[%s9 + $0x10] sm:$0xff]
        %v1828 = vld [vmem:[%s9 + $0x18] sm:$0xff]
        %v1829 = vld [vmem:[%s9 + $0x20] sm:$0xff]
        %v1830 = vld [vmem:[%s9 + $0x28] sm:$0xff]
        %v1831 = vld [vmem:[%s9 + $0x30] sm:$0xff]
        %v1832 = vld [vmem:[%s9 + $0x38] sm:$0xff]
        %v1833 = vld [vmem:[%s10] sm:$0x1]
        %v1835 = vlaneseq
        %v1836 = vshrl.u32 %v1835, 7
        %v1837 = vsub.s32 0, %v1836
        %v1838 = vrot.slane %v1833, %v1837
        %vm1840 = vcmask 523264
        %v1842 = vsel %vm1840, %v1824, 0
        %1844 = vmatprep.subr.mxu0 0.0
        %1845 = vmatpush1.msra.mxu0 0.0
        %1846 = vmatprep.subr.mxu0 0.0
        %1847 = vmatpush1.msra.mxu0 0.0
        %1848 = vmatprep.subr.mxu0 0.0
        %1849 = vmatpush1.msra.mxu0 0.0
        %1850 = vmatprep.subr.mxu0 0.0
        %1851 = vmatpush1.msra.mxu0 0.0
        %1852 = vmatprep.subr.mxu0 0.0
        %1853 = vmatpush1.msra.mxu0 0.0
        %1854 = vmatprep.subr.mxu0 0.0
        %1855 = vmatpush1.msra.mxu0 0.0
        %1856 = vmatprep.subr.mxu0 0.0
        %1857 = vmatpush1.msra.mxu0 0.0
        %1858 = vmatprep.subr.mxu0 0.0
        %1859 = vmatpush1.msra.mxu0 0.0
        %1860 = vmatprep.subr.mxu0 0.0
        %1861 = vmatpush1.msra.mxu0 %v1832
        %1862 = vmatprep.subr.mxu0 0.0
        %1863 = vmatpush1.msra.mxu0 %v1831
        %1864 = vmatprep.subr.mxu0 0.0
        %1865 = vmatpush1.msra.mxu0 %v1830
        %1866 = vmatprep.subr.mxu0 0.0
        %1867 = vmatpush1.msra.mxu0 %v1829
        %1868 = vmatprep.subr.mxu0 0.0
        %1869 = vmatpush1.msra.mxu0 %v1828
        %1870 = vmatprep.subr.mxu0 0.0
        %1871 = vmatpush1.msra.mxu0 %v1827
        %1872 = vmatprep.subr.mxu0 0.0
        %1873 = vmatpush1.msra.mxu0 %v1826
        %1874 = vmatprep.subr.mxu0 0.0
        %1875 = vmatpush1.msra.mxu0 %v1825
        %1876 = vmatprep.subr.mxu0 0.0
        %1877 = vmatpush2.msra.mxu0 0.0
        %1878 = vmatprep.subr.mxu0 0.0
        %1879 = vmatpush2.msra.mxu0 0.0
        %1880 = vmatprep.subr.mxu0 0.0
        %1881 = vmatpush2.msra.mxu0 0.0
        %1882 = vmatprep.subr.mxu0 0.0
        %1883 = vmatpush2.msra.mxu0 0.0
        %1884 = vmatprep.subr.mxu0 0.0
        %1885 = vmatpush2.msra.mxu0 0.0
        %1886 = vmatprep.subr.mxu0 0.0
        %1887 = vmatpush2.msra.mxu0 0.0
        %1888 = vmatprep.subr.mxu0 0.0
        %1889 = vmatpush2.msra.mxu0 0.0
        %1890 = vmatprep.subr.mxu0 0.0
        %1891 = vmatpush2.msra.mxu0 0.0
        %1892 = vmatprep.subr.mxu0 0.0
        %1893 = vmatpush2.msra.mxu0 0.0
        %1894 = vmatprep.subr.mxu0 0.0
        %1895 = vmatpush2.msra.mxu0 0.0
        %1896 = vmatprep.subr.mxu0 0.0
        %1897 = vmatpush2.msra.mxu0 0.0
        %1898 = vmatprep.subr.mxu0 0.0
        %1899 = vmatpush2.msra.mxu0 0.0
        %1900 = vmatprep.subr.mxu0 0.0
        %1901 = vmatpush2.msra.mxu0 0.0
        %1902 = vmatprep.subr.mxu0 0.0
        %1903 = vmatpush2.msra.mxu0 0.0
        %1904 = vmatprep.subr.mxu0 0.0
        %1905 = vmatpush2.msra.mxu0 0.0
        %1906 = vmatprep.subr.mxu0 0.0
        %1907 = vmatpush2.msra.mxu0 0.0
        %1908 = vmatprep.mubr.f32.mxu0 0.0
        %1909 = vmatmul.mubr.f32.gmra.mxu0 %v1842
        %v1910 = vpop.f32.mrf.mxu0
        %v1911 = vadd.f32 %v1838, %v1910
        %v1912 = vpop.f32.mrf.mxu0
        %1913 = vdwg.mxu0
        %v1914 = vadd.f32 %v1911, %v1739
        %v1915 = vld [vmem:[%s11] sm:$0x1]
        %v1916 = vld [vmem:[%s12] sm:$0x1]
        %v1917 = vsel %vm607, %v1914, 0.0
        %1918 = vadd.xlane.f32.xlu0 %v1917
        %v1919 = vpop.xlane.xlu0 %1918
        %v1920 = vmul.f32 %v1919, %v1715
        %v1921 = vsub.f32 %v1914, %v1920
        %v1922 = vmul.f32 %v1921, %v1921
        %v1923 = vsel %vm607, %v1922, 0.0
        %1924 = vadd.xlane.f32.xlu0 %v1923
        %v1925 = vpop.xlane.xlu0 %1924
        %v1926 = vmul.f32 %v1925, %v1715
        %v1927 = vadd.f32 %v1926, 1e-06
        %v1928 = vrsqrt.pop %v1927
        %v1929 = vmul.f32 %v1921, %v1928
        %v1931 = vlaneseq
        %v1932 = vshrl.u32 %v1931, 7
        %v1933 = vsub.s32 0, %v1932
        %v1934 = vrot.slane %v1915, %v1933
        %v1936 = vmul.f32 %v1929, %v1934
        %v1938 = vlaneseq
        %v1939 = vshrl.u32 %v1938, 7
        %v1940 = vsub.s32 0, %v1939
        %v1941 = vrot.slane %v1916, %v1940
        %v1943 = vadd.f32 %v1936, %v1941
        %1944 = vst.msk [vmem:[%s589] sm:$0xff] %vm607, %v1943
        %s1945 = sand.u32 %s351, 1
        %s1946 = scalar_lea.sflag [#allocation4], %s1945
        %s1947 = sand.u32 %s351, 1
        %s1948 = smul.addr %s1947, 8
        %s1949 = scalar_lea.vmem [#allocation10], %s1948
        %s1950 = sand.u32 %s379, 1
        %s1951 = scalar_lea.sflag [#allocation12], %s1950
        %s1952 = sand.u32 %s379, 1
        %s1953 = smul.addr %s1952, 32
        %s1954 = scalar_lea.vmem [#allocation11], %s1953
        // Predicated region
        $region89: #{tpu_custom_call.1} parent=71 // pred_check
          %p1955 = pneg %p361
        $region90: #{tpu_custom_call.1} parent=71 // pred_check_branch
          %1957 = sbr.rel (%p1955) target = $region92
        $region91: #{tpu_custom_call.1} parent=71 // pred_region
          %s1959 = ssub.s32 128, 128
          %1960 = vsyncadd %s1946, %s1959
          %s1961 = sadd.s32 %s44, %s43
          %s1962 = smul.addr %s1961, 128
          %s1963 = scalar_lea.hbm %s13, %s1962
          %s1965 = sshll.u32 %s1949, 4
          %s1966 = int_to_ptr.vmem [resolvable:$true] %s1965
          %1968 = dma.vmem_to_hbm [thread:$0]  %s1966, 128, %s1963, %s1946
        $region92: #{tpu_custom_call.1} parent=71 // pred_fallthru
          _
        // Predicated region
        $region93: #{tpu_custom_call.1} parent=71 // pred_check
          %p1969 = pneg %p389
        $region94: #{tpu_custom_call.1} parent=71 // pred_check_branch
          %1971 = sbr.rel (%p1969) target = $region96
        $region95: #{tpu_custom_call.1} parent=71 // pred_region
          %s1973 = ssub.s32 512, 512
          %1974 = vsyncadd %s1951, %s1973
          %s1975 = smul.addr %s43, 4
          %s1976 = sadd.s32 %s44, %s1975
          %s1977 = smul.addr %s1976, 128
          %s1978 = scalar_lea.hbm %s14, %s1977
          %s1979 = sshll.u32 %s1954, 4
          %s1980 = int_to_ptr.vmem [resolvable:$true] %s1979
          %1985 = dma.vmem_to_hbm [thread:$0]  %s1980, 512, %s1978, %s1951, 128, 128, 8
        $region96: #{tpu_custom_call.1} parent=71 // pred_fallthru
          _
      $region72: #{tpu_custom_call.1} parent=5 // pred_fallthru
        _
      %p1986 = scmp.le.s32.totalorder 2, %s34
      // Predicated region
      $region97: #{tpu_custom_call.1} parent=5 // pred_check
        %p1987 = pneg %p1986
      $region98: #{tpu_custom_call.1} parent=5 // pred_check_branch
        %1989 = sbr.rel (%p1987) target = $region100
      $region99: #{tpu_custom_call.1} parent=5 // pred_region
        %s1990 = ssub.s32 %s34, 2
        // Predicated region
        $region101: #{tpu_custom_call.1} parent=99 // pred_check
          %p1991 = pneg %p367
        $region102: #{tpu_custom_call.1} parent=99 // pred_check_branch
          %1993 = sbr.rel (%p1991) target = $region104
        $region103: #{tpu_custom_call.1} parent=99 // pred_region
          %s1994 = sand.u32 %s352, 1
          %s1995 = scalar_lea.sflag [#allocation4], %s1994
          %s1996 = sand.u32 %s352, 1
          %s1997 = smul.addr %s1996, 8
          %s1998 = scalar_lea.vmem [#allocation10], %s1997
          %1999 = dma.done %s1995, 128
        $region104: #{tpu_custom_call.1} parent=99 // pred_fallthru
          _
        // Predicated region
        $region105: #{tpu_custom_call.1} parent=99 // pred_check
          %p2000 = pneg %p395
        $region106: #{tpu_custom_call.1} parent=99 // pred_check_branch
          %2002 = sbr.rel (%p2000) target = $region108
        $region107: #{tpu_custom_call.1} parent=99 // pred_region
          %s2003 = sand.u32 %s380, 1
          %s2004 = scalar_lea.sflag [#allocation12], %s2003
          %s2005 = sand.u32 %s380, 1
          %s2006 = smul.addr %s2005, 32
          %s2007 = scalar_lea.vmem [#allocation11], %s2006
          %2008 = dma.done %s2004, 512
        $region108: #{tpu_custom_call.1} parent=99 // pred_fallthru
          _
      $region100: #{tpu_custom_call.1} parent=5 // pred_fallthru
        _
    $region6: #{tpu_custom_call.1} parent=1 // loop_footer
      %s38 = sadd.s32 1, %s34
    $region7: #{tpu_custom_call.1} parent=1 // loop_footer_branch
      %33 = sbr.rel target = $region3
    $region8: #{tpu_custom_call.1} parent=1 // loop_exit
      _
    %2009 = vsyncpa [#allocation3], 1
    %s2010 = scalar_lea.sflag [#allocation3], 1
    %2011 = vsyncpa %s2010, 1
    %2012 = vsyncpa [#allocation6], 1
    %s2013 = scalar_lea.sflag [#allocation6], 1
    %2014 = vsyncpa %s2013, 1
    %2015 = vsyncpa [#allocation9], 1
    %2016 = vsyncpa [#allocation4], 1
    %s2017 = scalar_lea.sflag [#allocation4], 1
    %2018 = vsyncpa %s2017, 1
    %2019 = vsyncpa [#allocation12], 1
    %s2020 = scalar_lea.sflag [#allocation12], 1
    %2021 = vsyncpa %s2020, 1

</llo_original>
